<compile_context>
chip_gen: v7x
topology: tpu7x:2x2x1
jax: 0.10.0
libtpu: 0.0.40
codegen_flags: <defaults>
</compile_context>

<pallas_src>
import jax
import jax.numpy as jnp
from jax.experimental import pallas as pl
from jax.experimental.pallas import tpu as pltpu

NUM_JOINTS = 24                       # 1 global + 23 body joints
NUM_BETAS = 10
POSE_FEAT = (NUM_JOINTS - 1) * 9      # 207
NUM_FEATS = 1 + NUM_BETAS + POSE_FEAT # 218 = [1 | betas | pose_feat]

# standard SMPL kinematic tree
SMPL_PARENTS = (-1, 0, 0, 0, 1, 2, 3, 4, 5, 6, 7, 8, 9, 9, 9,
                12, 13, 14, 16, 17, 18, 19, 20, 21)


# ---------------------------------------------------------------------------
# Fused Pallas kernel: blend GEMM + LBS skinning + joint regression
# ---------------------------------------------------------------------------
def _fused_lbs_kernel(feats_ref, a_ref, wblend_ref, wt_ref, jreg_ref, out_ref):
    TB = feats_ref.shape[0]
    V = wt_ref.shape[1]

    # (1) template + shape blend + pose blend in one GEMM: (TB,218)@(218,3V)
    vp = jnp.dot(feats_ref[...], wblend_ref[...],
                 preferred_element_type=jnp.float32)               # (TB, 3V) f32
    x = vp[:, 0:V]
    y = vp[:, V:2 * V]
    z = vp[:, 2 * V:3 * V]

    # (2) per-vertex blended skinning transforms: one (12*TB,24)@(24,V) GEMM.
    #     Row layout: row = (k*3 + c)*TB + t_local; k = column of A, c = coord.
    tm = jnp.dot(a_ref[0], wt_ref[...],
                 preferred_element_type=jnp.float32)               # (12*TB, V) f32

    def g(k, c):
        r = (k * 3 + c) * TB
        return tm[r:r + TB, :]                                     # TB-aligned slice

    # (3) affine apply; stack coordinate-major so the joint regression is one
    #     GEMM with M = 3*TB.
    verts = jnp.concatenate(
        [g(0, c) * x + g(1, c) * y + g(2, c) * z + g(3, c) for c in range(3)],
        axis=0)                                                    # (3*TB, V) f32
    joints = jnp.dot(verts, jreg_ref[...],
                     preferred_element_type=jnp.float32)           # (3*TB, 24) f32
    for c in range(3):
        out_ref[c] = joints[c * TB:(c + 1) * TB, :]


def fused_lbs_call(feats_q, a_blk, w_blend, w_t, jreg_t, block_frames):
    TB = block_frames
    T_pad, F = feats_q.shape
    nblk = T_pad // TB
    V = w_t.shape[1]

    flops = 2 * T_pad * V * (3 * F + 12 * NUM_JOINTS + 3 * NUM_JOINTS)
    bytes_accessed = (feats_q.size * 2 + a_blk.size * 2 + w_blend.size * 2
                      + w_t.size * 2 + jreg_t.size * 4
                      + 3 * T_pad * NUM_JOINTS * 4)

    return pl.pallas_call(
        _fused_lbs_kernel,
        out_shape=jax.ShapeDtypeStruct((3, T_pad, NUM_JOINTS), jnp.float32),
        grid_spec=pltpu.PrefetchScalarGridSpec(
            num_scalar_prefetch=0,
            grid=(nblk,),
            in_specs=[
                pl.BlockSpec((TB, F), lambda i: (i, 0)),                  # feats
                pl.BlockSpec((1, 12 * TB, NUM_JOINTS), lambda i: (i, 0, 0)),  # A rows
                pl.BlockSpec((F, 3 * V), lambda i: (0, 0)),               # W_blend
                pl.BlockSpec((NUM_JOINTS, V), lambda i: (0, 0)),          # lbs W^T
                pl.BlockSpec((V, NUM_JOINTS), lambda i: (0, 0)),          # J_reg^T
            ],
            out_specs=pl.BlockSpec((3, TB, NUM_JOINTS), lambda i: (0, i, 0))),
        compiler_params=pltpu.CompilerParams(
            dimension_semantics=("parallel",),
            vmem_limit_bytes=64 * 1024 * 1024),
        cost_estimate=pl.CostEstimate(flops=int(flops), transcendentals=0,
                                      bytes_accessed=int(bytes_accessed)),
    )(feats_q, a_blk, w_blend, w_t, jreg_t)


# ---------------------------------------------------------------------------
# Glue: kinematic-chain rigid transforms (mirrors smplx.lbs.batch_rigid_transform)
# ---------------------------------------------------------------------------
def batch_rigid_transform(rot_mats, j_rest):
    # rot_mats: (T, 24, 3, 3), j_rest: (T, 24, 3)
    T = rot_mats.shape[0]
    parents = SMPL_PARENTS
    rel = jnp.concatenate(
        [j_rest[:, :1],
         j_rest[:, 1:] - j_rest[:, jnp.array(parents[1:])]], axis=1)    # (T,24,3)
    top = jnp.concatenate([rot_mats, rel[..., None]], axis=-1)          # (T,24,3,4)
    bottom = jnp.broadcast_to(jnp.array([0., 0., 0., 1.], jnp.float32),
                              (T, NUM_JOINTS, 1, 4))
    tmats = jnp.concatenate([top, bottom], axis=-2)                     # (T,24,4,4)
    chain = [tmats[:, 0]]
    for i in range(1, NUM_JOINTS):
        chain.append(jnp.matmul(chain[parents[i]], tmats[:, i]))
    transforms = jnp.stack(chain, axis=1)                               # (T,24,4,4)
    j_h = jnp.concatenate(
        [j_rest, jnp.zeros((T, NUM_JOINTS, 1), jnp.float32)], axis=-1)[..., None]
    corr = jnp.matmul(transforms, j_h)                                  # (T,24,4,1)
    return transforms - jnp.pad(corr, ((0, 0), (0, 0), (0, 0), (3, 0)))


# ---------------------------------------------------------------------------
# SMPLWrapper.forward equivalent
# ---------------------------------------------------------------------------
def smpl_wrapper_forward(smpl_params, model_params, force_tpose=False,
                         block_frames=16):
    body_pose = smpl_params['body_pose'].astype(jnp.float32)            # (T,23,3,3)
    global_orient = smpl_params['global_orient'].astype(jnp.float32)    # (T,1,3,3)
    betas = smpl_params['betas'].astype(jnp.float32)                    # (T,10)
    T, NJ = body_pose.shape[:2]
    if force_tpose:
        body_pose = jnp.broadcast_to(jnp.eye(3, dtype=jnp.float32), (T, NJ, 3, 3))

    rot_mats = jnp.concatenate([global_orient, body_pose], axis=1)      # (T,24,3,3)
    pose_feat = (rot_mats[:, 1:] - jnp.eye(3, dtype=jnp.float32)).reshape(T, POSE_FEAT)
    feats = jnp.concatenate(
        [jnp.ones((T, 1), jnp.float32), betas, pose_feat], axis=1)      # (T,218)

    # rest joints: tiny precomputed regression (hoisted off the vertex path)
    j_rest = model_params['j_template'][None] + jnp.einsum(
        'tb,bjc->tjc', betas, model_params['j_shapedirs'])              # (T,24,3)

    A = batch_rigid_transform(rot_mats, j_rest)                         # (T,24,4,4)

    TB = block_frames
    assert TB % 8 == 0
    T_pad = ((T + TB - 1) // TB) * TB
    nblk = T_pad // TB

    # (k,c)-major skinning LHS rows, flattened per block to (12*TB, 24):
    #   a_blk[blk, (k*3+c)*TB + t, m] = A[blk*TB + t, m, c, k]
    a12 = jnp.transpose(A[:, :, :3, :], (3, 2, 0, 1)).reshape(12, T, NUM_JOINTS)
    a12 = jnp.pad(a12, ((0, 0), (0, T_pad - T), (0, 0)))
    a_blk = jnp.transpose(a12.reshape(12, nblk, TB, NUM_JOINTS),
                          (1, 0, 2, 3)).reshape(nblk, 12 * TB, NUM_JOINTS)

    feats_pad = jnp.pad(feats, ((0, T_pad - T), (0, 0)))

    joints_cm = fused_lbs_call(
        feats_pad.astype(jnp.bfloat16), a_blk.astype(jnp.bfloat16),
        model_params['w_blend'], model_params['w_t'], model_params['jreg_t'],
        TB)                                                             # (3,T_pad,24)
    return jnp.transpose(joints_cm[:, :T], (1, 2, 0))                   # (T,24,3)


# ---------------------------------------------------------------------------
# Pure-JAX reference (standard LBS formulation, mirrors the kernel's bf16
# weight quantization so the comparison isolates kernel math errors)
# ---------------------------------------------------------------------------
def reference_forward(smpl_params, mp, force_tpose=False):
    body_pose = smpl_params['body_pose'].astype(jnp.float32)
    global_orient = smpl_params['global_orient'].astype(jnp.float32)
    betas = smpl_params['betas'].astype(jnp.float32)
    T, NJ = body_pose.shape[:2]
    if force_tpose:
        body_pose = jnp.broadcast_to(jnp.eye(3, dtype=jnp.float32), (T, NJ, 3, 3))
    rot = jnp.concatenate([global_orient, body_pose], axis=1)
    pf = (rot[:, 1:] - jnp.eye(3, dtype=jnp.float32)).reshape(T, POSE_FEAT)

    hi = jax.lax.Precision.HIGHEST
    wb = mp['w_blend'].astype(jnp.float32)                  # de-quantized weights
    F = wb.shape[0]
    V = wb.shape[1] // 3
    wb3 = wb.reshape(F, 3, V)
    v_template = wb3[0]                                     # (3,V)
    shapedirs = wb3[1:1 + NUM_BETAS]                        # (10,3,V)
    posedirs = wb3[1 + NUM_BETAS:]                          # (207,3,V)
    lbs_w = mp['w_t'].astype(jnp.float32).T                 # (V,24)
    jreg = mp['jreg_t'].T                                   # (24,V) f32

    betas_q = betas.astype(jnp.bfloat16).astype(jnp.float32)
    pf_q = pf.astype(jnp.bfloat16).astype(jnp.float32)
    v_posed = (v_template[None]
               + jnp.einsum('tb,bcv->tcv', betas_q, shapedirs, precision=hi)
               + jnp.einsum('tp,pcv->tcv', pf_q, posedirs, precision=hi))   # (T,3,V)

    j_rest = mp['j_template'][None] + jnp.einsum('tb,bjc->tjc', betas,
                                                 mp['j_shapedirs'])
    A = batch_rigid_transform(rot, j_rest)
    A_q = A.astype(jnp.bfloat16).astype(jnp.float32)
    Tmat = jnp.einsum('vj,tjck->tvck', lbs_w, A_q, precision=hi)            # (T,V,4,4)
    vh = jnp.concatenate([jnp.transpose(v_posed, (0, 2, 1)),
                          jnp.ones((T, V, 1), jnp.float32)], axis=-1)       # (T,V,4)
    verts = jnp.einsum('tvck,tvk->tcv', Tmat[:, :, :3, :], vh, precision=hi)
    return jnp.einsum('jv,tcv->tjc', jreg, verts, precision=hi)             # (T,24,3)


# ---------------------------------------------------------------------------
# Deterministic synthetic SMPL model parameters (no .pt/.pkl loading)
# ---------------------------------------------------------------------------
def init_model_params(V, key):
    assert V % 128 == 0
    k1, k2, k3, k4, k5 = jax.random.split(key, 5)
    v_template = 0.3 * jax.random.normal(k1, (3, V), jnp.float32)
    shapedirs = 0.05 * jax.random.normal(k2, (NUM_BETAS, 3, V), jnp.float32)
    posedirs = 0.01 * jax.random.normal(k3, (POSE_FEAT, 3, V), jnp.float32)
    j_regressor = jax.nn.softmax(
        4.0 * jax.random.normal(k4, (NUM_JOINTS, V), jnp.float32), axis=-1)
    lbs_weights = jax.nn.softmax(
        4.0 * jax.random.normal(k5, (V, NUM_JOINTS), jnp.float32), axis=-1)

    # fused blend weight: rows = [v_template | shapedirs | posedirs], cols c*V+v
    w_blend = jnp.concatenate(
        [v_template.reshape(1, 3 * V),
         shapedirs.reshape(NUM_BETAS, 3 * V),
         posedirs.reshape(POSE_FEAT, 3 * V)], axis=0)                  # (218, 3V)

    # tiny rest-joint precomputes (hoists J@v_shaped off the vertex path)
    j_template = jnp.einsum('jv,cv->jc', j_regressor, v_template)      # (24,3)
    j_shapedirs = jnp.einsum('jv,bcv->bjc', j_regressor, shapedirs)    # (10,24,3)

    return {
        'w_blend': w_blend.astype(jnp.bfloat16),     # (218, 3V) bf16
        'w_t': lbs_weights.T.astype(jnp.bfloat16),   # (24, V)   bf16
        'jreg_t': j_regressor.T,                     # (V, 24)   f32
        'j_template': j_template,                    # (24, 3)   f32
        'j_shapedirs': j_shapedirs,                  # (10, 24, 3) f32
    }


if __name__ == "__main__":
    # TODO(synk): real SMPL would load v_template/shapedirs/posedirs/J_regressor
    # from the model file and the `visualize` plotly branch is omitted.
    T, V, TB = 37, 256, 16            # T not a multiple of TB to exercise padding

    model_params = init_model_params(V, jax.random.PRNGKey(1))

    key = jax.random.PRNGKey(0)
    kg, kb, kbeta = jax.random.split(key, 3)
    smpl_params = {
        'global_orient': jnp.eye(3, dtype=jnp.float32)
                         + 0.1 * jax.random.normal(kg, (T, 1, 3, 3), jnp.float32),
        'body_pose': jnp.eye(3, dtype=jnp.float32)
                     + 0.1 * jax.random.normal(kb, (T, 23, 3, 3), jnp.float32),
        'betas': jax.random.normal(kbeta, (T, NUM_BETAS), jnp.float32),
    }

    joints = smpl_wrapper_forward(smpl_params, model_params, block_frames=TB)
    joints = jax.block_until_ready(joints)
    assert joints.shape == (T, NUM_JOINTS, 3)

    ref = jax.block_until_ready(reference_forward(smpl_params, model_params))
    err = float(jnp.max(jnp.abs(joints - ref)))
    assert jnp.allclose(joints, ref, atol=1e-2, rtol=1e-2), err

    # also exercise the force_tpose branch of SMPLWrapper.forward
    joints_t = jax.block_until_ready(
        smpl_wrapper_forward(smpl_params, model_params, force_tpose=True,
                             block_frames=TB))
    ref_t = jax.block_until_ready(
        reference_forward(smpl_params, model_params, force_tpose=True))
    assert jnp.allclose(joints_t, ref_t, atol=1e-2, rtol=1e-2)

    print("KERNEL_OK")
</pallas_src>

<mosaic_0001>
module attributes {stable_mosaic.version = 11 : i64} {
  func.func @_fused_lbs_kernel(%arg0: i32, %arg1: memref<16x218xbf16, #tpu.memory_space<vmem>>, %arg2: memref<1x192x24xbf16, #tpu.memory_space<vmem>>, %arg3: memref<218x768xbf16, #tpu.memory_space<vmem>>, %arg4: memref<24x256xbf16, #tpu.memory_space<vmem>>, %arg5: memref<256x24xf32, #tpu.memory_space<vmem>>, %arg6: memref<3x16x24xf32, #tpu.memory_space<vmem>>) attributes {dimension_semantics = [#tpu.dimension_semantics<parallel>], iteration_bounds = array<i64: 3>, scalar_prefetch = 0 : i64, scratch_operands = 0 : i64, tpu.core_type = #tpu.core_type<tc>, window_params = [{transform_indices = @transform_0, window_bounds = array<i64: 16, 218>}, {transform_indices = @transform_1, window_bounds = array<i64: 1, 192, 24>}, {pipeline_mode = #tpu.pipeline_mode<synchronous>, transform_indices = @transform_2, window_bounds = array<i64: 218, 768>}, {pipeline_mode = #tpu.pipeline_mode<synchronous>, transform_indices = @transform_3, window_bounds = array<i64: 24, 256>}, {pipeline_mode = #tpu.pipeline_mode<synchronous>, transform_indices = @transform_4, window_bounds = array<i64: 256, 24>}, {transform_indices = @transform_5, window_bounds = array<i64: 3, 16, 24>}]} {
    %c0 = arith.constant 0 : index
    %c0_0 = arith.constant 0 : index
    %0 = vector.load %arg1[%c0, %c0_0] : memref<16x218xbf16, #tpu.memory_space<vmem>>, vector<16x218xbf16>
    %c0_1 = arith.constant 0 : index
    %c0_2 = arith.constant 0 : index
    %1 = vector.load %arg3[%c0_1, %c0_2] : memref<218x768xbf16, #tpu.memory_space<vmem>>, vector<218x768xbf16>
    %cst = arith.constant dense<0.000000e+00> : vector<16x768xf32>
    %2 = tpu.matmul %0, %1, %cst {dimension_numbers = #tpu.dot_dimension_numbers<[1], [0], [0], [1], [0, 0, 1, 1], [], []>} : vector<16x218xbf16>, vector<218x768xbf16>, vector<16x768xf32> -> vector<16x768xf32>
    %3 = vector.extract_strided_slice %2 {offsets = [0, 0], sizes = [16, 256], strides = [1, 1]} : vector<16x768xf32> to vector<16x256xf32>
    %4 = vector.extract_strided_slice %2 {offsets = [0, 256], sizes = [16, 256], strides = [1, 1]} : vector<16x768xf32> to vector<16x256xf32>
    %5 = vector.extract_strided_slice %2 {offsets = [0, 512], sizes = [16, 256], strides = [1, 1]} : vector<16x768xf32> to vector<16x256xf32>
    %c0_3 = arith.constant 0 : index
    %c0_4 = arith.constant 0 : index
    %c0_5 = arith.constant 0 : index
    %6 = vector.load %arg2[%c0_3, %c0_4, %c0_5] : memref<1x192x24xbf16, #tpu.memory_space<vmem>>, vector<1x192x24xbf16>
    %7 = vector.shape_cast %6 : vector<1x192x24xbf16> to vector<192x24xbf16>
    %c0_6 = arith.constant 0 : index
    %c0_7 = arith.constant 0 : index
    %8 = vector.load %arg4[%c0_6, %c0_7] : memref<24x256xbf16, #tpu.memory_space<vmem>>, vector<24x256xbf16>
    %cst_8 = arith.constant dense<0.000000e+00> : vector<192x256xf32>
    %9 = tpu.matmul %7, %8, %cst_8 {dimension_numbers = #tpu.dot_dimension_numbers<[1], [0], [0], [1], [0, 0, 1, 1], [], []>} : vector<192x24xbf16>, vector<24x256xbf16>, vector<192x256xf32> -> vector<192x256xf32>
    %10 = vector.extract_strided_slice %9 {offsets = [0, 0], sizes = [16, 256], strides = [1, 1]} : vector<192x256xf32> to vector<16x256xf32>
    %11 = arith.mulf %10, %3 : vector<16x256xf32>
    %12 = vector.extract_strided_slice %9 {offsets = [48, 0], sizes = [16, 256], strides = [1, 1]} : vector<192x256xf32> to vector<16x256xf32>
    %13 = arith.mulf %12, %4 : vector<16x256xf32>
    %14 = arith.addf %11, %13 : vector<16x256xf32>
    %15 = vector.extract_strided_slice %9 {offsets = [96, 0], sizes = [16, 256], strides = [1, 1]} : vector<192x256xf32> to vector<16x256xf32>
    %16 = arith.mulf %15, %5 : vector<16x256xf32>
    %17 = arith.addf %14, %16 : vector<16x256xf32>
    %18 = vector.extract_strided_slice %9 {offsets = [144, 0], sizes = [16, 256], strides = [1, 1]} : vector<192x256xf32> to vector<16x256xf32>
    %19 = arith.addf %17, %18 : vector<16x256xf32>
    %20 = vector.extract_strided_slice %9 {offsets = [16, 0], sizes = [16, 256], strides = [1, 1]} : vector<192x256xf32> to vector<16x256xf32>
    %21 = arith.mulf %20, %3 : vector<16x256xf32>
    %22 = vector.extract_strided_slice %9 {offsets = [64, 0], sizes = [16, 256], strides = [1, 1]} : vector<192x256xf32> to vector<16x256xf32>
    %23 = arith.mulf %22, %4 : vector<16x256xf32>
    %24 = arith.addf %21, %23 : vector<16x256xf32>
    %25 = vector.extract_strided_slice %9 {offsets = [112, 0], sizes = [16, 256], strides = [1, 1]} : vector<192x256xf32> to vector<16x256xf32>
    %26 = arith.mulf %25, %5 : vector<16x256xf32>
    %27 = arith.addf %24, %26 : vector<16x256xf32>
    %28 = vector.extract_strided_slice %9 {offsets = [160, 0], sizes = [16, 256], strides = [1, 1]} : vector<192x256xf32> to vector<16x256xf32>
    %29 = arith.addf %27, %28 : vector<16x256xf32>
    %30 = vector.extract_strided_slice %9 {offsets = [32, 0], sizes = [16, 256], strides = [1, 1]} : vector<192x256xf32> to vector<16x256xf32>
    %31 = arith.mulf %30, %3 : vector<16x256xf32>
    %32 = vector.extract_strided_slice %9 {offsets = [80, 0], sizes = [16, 256], strides = [1, 1]} : vector<192x256xf32> to vector<16x256xf32>
    %33 = arith.mulf %32, %4 : vector<16x256xf32>
    %34 = arith.addf %31, %33 : vector<16x256xf32>
    %35 = vector.extract_strided_slice %9 {offsets = [128, 0], sizes = [16, 256], strides = [1, 1]} : vector<192x256xf32> to vector<16x256xf32>
    %36 = arith.mulf %35, %5 : vector<16x256xf32>
    %37 = arith.addf %34, %36 : vector<16x256xf32>
    %38 = vector.extract_strided_slice %9 {offsets = [176, 0], sizes = [16, 256], strides = [1, 1]} : vector<192x256xf32> to vector<16x256xf32>
    %39 = arith.addf %37, %38 : vector<16x256xf32>
    %40 = tpu.concatenate %19, %29, %39 in 0 : vector<16x256xf32>, vector<16x256xf32>, vector<16x256xf32> -> vector<48x256xf32>
    %c0_9 = arith.constant 0 : index
    %c0_10 = arith.constant 0 : index
    %41 = vector.load %arg5[%c0_9, %c0_10] : memref<256x24xf32, #tpu.memory_space<vmem>>, vector<256x24xf32>
    %cst_11 = arith.constant dense<0.000000e+00> : vector<48x24xf32>
    %42 = tpu.matmul %40, %41, %cst_11 {dimension_numbers = #tpu.dot_dimension_numbers<[1], [0], [0], [1], [0, 0, 1, 1], [], []>} : vector<48x256xf32>, vector<256x24xf32>, vector<48x24xf32> -> vector<48x24xf32>
    %43 = vector.extract_strided_slice %42 {offsets = [0, 0], sizes = [16, 24], strides = [1, 1]} : vector<48x24xf32> to vector<16x24xf32>
    %c0_12 = arith.constant 0 : index
    %c0_13 = arith.constant 0 : index
    %c0_14 = arith.constant 0 : index
    %44 = vector.load %arg6[%c0_12, %c0_13, %c0_14] : memref<3x16x24xf32, #tpu.memory_space<vmem>>, vector<1x16x24xf32>
    %45 = vector.shape_cast %44 : vector<1x16x24xf32> to vector<16x24xf32>
    %46 = vector.shape_cast %43 : vector<16x24xf32> to vector<1x16x24xf32>
    tpu.vector_store %arg6[%c0_12, %c0_13, %c0_14], %46 {strides = array<i32>} : memref<3x16x24xf32, #tpu.memory_space<vmem>>, vector<1x16x24xf32>,
    %47 = vector.extract_strided_slice %42 {offsets = [16, 0], sizes = [16, 24], strides = [1, 1]} : vector<48x24xf32> to vector<16x24xf32>
    %c1 = arith.constant 1 : index
    %c0_15 = arith.constant 0 : index
    %c0_16 = arith.constant 0 : index
    %48 = vector.load %arg6[%c1, %c0_15, %c0_16] : memref<3x16x24xf32, #tpu.memory_space<vmem>>, vector<1x16x24xf32>
    %49 = vector.shape_cast %48 : vector<1x16x24xf32> to vector<16x24xf32>
    %50 = vector.shape_cast %47 : vector<16x24xf32> to vector<1x16x24xf32>
    tpu.vector_store %arg6[%c1, %c0_15, %c0_16], %50 {strides = array<i32>} : memref<3x16x24xf32, #tpu.memory_space<vmem>>, vector<1x16x24xf32>,
    %51 = vector.extract_strided_slice %42 {offsets = [32, 0], sizes = [16, 24], strides = [1, 1]} : vector<48x24xf32> to vector<16x24xf32>
    %c2 = arith.constant 2 : index
    %c0_17 = arith.constant 0 : index
    %c0_18 = arith.constant 0 : index
    %52 = vector.load %arg6[%c2, %c0_17, %c0_18] : memref<3x16x24xf32, #tpu.memory_space<vmem>>, vector<1x16x24xf32>
    %53 = vector.shape_cast %52 : vector<1x16x24xf32> to vector<16x24xf32>
    %54 = vector.shape_cast %51 : vector<16x24xf32> to vector<1x16x24xf32>
    tpu.vector_store %arg6[%c2, %c0_17, %c0_18], %54 {strides = array<i32>} : memref<3x16x24xf32, #tpu.memory_space<vmem>>, vector<1x16x24xf32>,
    return
  }
  func.func @transform_0(%arg0: i32) -> (i32, i32) {
    %c0_i32 = arith.constant 0 : i32
    %c0_i32_0 = arith.constant 0 : i32
    return %arg0, %c0_i32 : i32, i32
  }
  func.func @transform_1(%arg0: i32) -> (i32, i32, i32) {
    %c0_i32 = arith.constant 0 : i32
    %c0_i32_0 = arith.constant 0 : i32
    %c0_i32_1 = arith.constant 0 : i32
    return %arg0, %c0_i32, %c0_i32_0 : i32, i32, i32
  }
  func.func @transform_2(%arg0: i32) -> (i32, i32) {
    %c0_i32 = arith.constant 0 : i32
    %c0_i32_0 = arith.constant 0 : i32
    %c0_i32_1 = arith.constant 0 : i32
    return %c0_i32, %c0_i32_0 : i32, i32
  }
  func.func @transform_3(%arg0: i32) -> (i32, i32) {
    %c0_i32 = arith.constant 0 : i32
    %c0_i32_0 = arith.constant 0 : i32
    %c0_i32_1 = arith.constant 0 : i32
    return %c0_i32, %c0_i32_0 : i32, i32
  }
  func.func @transform_4(%arg0: i32) -> (i32, i32) {
    %c0_i32 = arith.constant 0 : i32
    %c0_i32_0 = arith.constant 0 : i32
    %c0_i32_1 = arith.constant 0 : i32
    return %c0_i32, %c0_i32_0 : i32, i32
  }
  func.func @transform_5(%arg0: i32) -> (i32, i32, i32) {
    %c0_i32 = arith.constant 0 : i32
    %c0_i32_0 = arith.constant 0 : i32
    %c0_i32_1 = arith.constant 0 : i32
    return %c0_i32, %arg0, %c0_i32_0 : i32, i32, i32
  }
}

</mosaic_0001>

<llo_original>
// kernel: tpu_custom_call.1
$region0: #{tpu_custom_call.1}
  #allocation0 [shape = 'u32[]', space=smem, size = 0x4, offset = 0x4, fixed_abs, tag = 'smem constant byte address 0x4 - core index']
  #allocation1 [shape = 'u32[144,128]{1,0:T(1,128)}', space=vmem, size = 0x12000, scoped, tag = 'internal scratch']
  #allocation12 [shape = 's32[]', space=sflag, size = 0x4, offset = 0, fixed_abs, tag = 'sflag constant byte address 0x0 - dummy sync flag']
  %s0 = inlined_call_operand.hbm [shape: bf16[48,218], index: 0, kind: input, shape index: {}]
  %s1 = inlined_call_operand.hbm [shape: bf16[3,192,24], index: 1, kind: input, shape index: {}]
  %s2 = inlined_call_operand.hbm [shape: bf16[218,768], index: 2, kind: input, shape index: {}]
  %s3 = inlined_call_operand.hbm [shape: bf16[24,256], index: 3, kind: input, shape index: {}]
  %s4 = inlined_call_operand.hbm [shape: f32[256,24], index: 4, kind: input, shape index: {}]
  %s5 = inlined_call_operand.hbm [shape: f32[3,48,24], index: 5, kind: output, shape index: {}]
  %s6 = sld [smem:[#allocation0]]
  $region73: #{tpu_custom_call.1} parent=0
    _
  %s8 = ssub.s32 1, %s6
  %s9 = scalar_select 0, %s8, %s6
  $region1: #{tpu_custom_call.1} parent=0
    #allocation2 [shape = 'u8[16384]{0}', space=vmem, size = 0x4000, scoped, tag = 'input window, operand 0']
    #allocation3 [shape = 's32[2]{0}', space=sflag, size = 0x8, scoped, tag = 'scoped memory for tpu_custom_call.1']
    #allocation4 [shape = 's32[2]{0}', space=sflag, size = 0x8, scoped, tag = 'scoped memory for tpu_custom_call.1']
    #allocation5 [shape = 'u8[98304]{0}', space=vmem, size = 0x18000, scoped, tag = 'input window, operand 1']
    #allocation6 [shape = 's32[2]{0}', space=sflag, size = 0x8, scoped, tag = 'scoped memory for tpu_custom_call.1']
    #allocation7 [shape = 'u8[344064]{0}', space=vmem, size = 0x54000, scoped, tag = 'input window, operand 2, single buffered']
    #allocation8 [shape = 'u8[12288]{0}', space=vmem, size = 0x3000, scoped, tag = 'input window, operand 3, single buffered']
    #allocation9 [shape = 's32[1]{0}', space=sflag, size = 0x4, scoped, tag = 'scoped memory for tpu_custom_call.1']
    #allocation10 [shape = 'u8[131072]{0}', space=vmem, size = 0x20000, scoped, tag = 'input window, operand 4, single buffered']
    #allocation11 [shape = 'u8[49152]{0}', space=vmem, size = 0xc000, scoped, tag = 'output window, operand 0']
    %10 = vsyncpa [#allocation3], 0
    %s11 = scalar_lea.sflag [#allocation3], 1
    %12 = vsyncpa %s11, 0
    %13 = vsyncpa [#allocation6], 0
    %s14 = scalar_lea.sflag [#allocation6], 1
    %15 = vsyncpa %s14, 0
    %16 = vsyncpa [#allocation9], 0
    %17 = vsyncpa [#allocation4], 0
    %s18 = scalar_lea.sflag [#allocation4], 1
    %19 = vsyncpa %s18, 0
    loop: start=0, step=1, limit=5
    $region2: #{tpu_custom_call.1} parent=1 // loop_pre_header
      _
    $region3: #{tpu_custom_call.1} parent=1 // loop_header
      %s21 = sphi 0, %s25
      %p22 = scmp.ge.s32.totalorder %s21, 5
      %s31 = sphi 0, %s33
      %s34 = sphi 0, %s31
      %s35 = sphi 0, %s34
      %s51 = sphi 0, %s35
      %s57 = sphi 0, %s59
      %s60 = sphi 0, %s57
      %s61 = sphi 0, %s60
      %s77 = sphi 0, %s61
      %s81 = sphi 0, %s81
      %s83 = sphi 0, %s81
      %s84 = sphi 0, %s83
      %s98 = sphi 0, %s84
      %s102 = sphi 0, %s102
      %s104 = sphi 0, %s102
      %s105 = sphi 0, %s104
      %s119 = sphi 0, %s105
      %s123 = sphi 0, %s123
      %s125 = sphi 0, %s123
      %s126 = sphi 0, %s125
      %s140 = sphi 0, %s126
      %s146 = sphi 0, %s148
      %s149 = sphi 0, %s146
      %s150 = sphi 0, %s149
      %s166 = sphi 0, %s150
    $region4: #{tpu_custom_call.1} parent=1 // loop_header_branch
      %24 = sbr.rel (%p22) target = $region8
    $region5: #{tpu_custom_call.1} parent=1 // loop_body
      %s26 = ssub.s32 %s21, 1
      %s27 = ssub.s32 %s21, 2
      %s28 = sadd.s32 %s21, 1
      %s29 = ssub.s32 %s21, %s28
      %p30 = scmp.eq.s32.totalorder %s29, 0
      %s32 = sadd.s32 %s31, 1
      %s33 = scalar_select %p30, %s31, %s32
      %p36 = pneg %p30
      %p37 = scmp.eq.s32.totalorder %s21, 2
      %p38 = por %p36, %p37
      %p39 = scmp.ne.s32.totalorder %s31, %s34
      %p40 = scmp.eq.s32.totalorder %s21, 0
      %p41 = por %p39, %p40
      %p42 = scmp.ne.s32.totalorder %s31, %s34
      %p43 = scmp.eq.s32.totalorder %s26, 2
      %p44 = por %p42, %p43
      %p45 = scmp.ne.s32.totalorder %s34, %s35
      %p46 = scmp.eq.s32.totalorder %s26, 0
      %p47 = por %p45, %p46
      %p48 = scmp.ne.s32.totalorder %s34, %s35
      %p49 = scmp.eq.s32.totalorder %s27, 2
      %p50 = por %p48, %p49
      %p52 = scmp.ne.s32.totalorder %s35, %s51
      %p53 = scmp.eq.s32.totalorder %s27, 0
      %p54 = por %p52, %p53
      %s55 = ssub.s32 %s21, %s28
      %p56 = scmp.eq.s32.totalorder %s55, 0
      %s58 = sadd.s32 %s57, 1
      %s59 = scalar_select %p56, %s57, %s58
      %p62 = pneg %p56
      %p63 = scmp.eq.s32.totalorder %s21, 2
      %p64 = por %p62, %p63
      %p65 = scmp.ne.s32.totalorder %s57, %s60
      %p66 = scmp.eq.s32.totalorder %s21, 0
      %p67 = por %p65, %p66
      %p68 = scmp.ne.s32.totalorder %s57, %s60
      %p69 = scmp.eq.s32.totalorder %s26, 2
      %p70 = por %p68, %p69
      %p71 = scmp.ne.s32.totalorder %s60, %s61
      %p72 = scmp.eq.s32.totalorder %s26, 0
      %p73 = por %p71, %p72
      %p74 = scmp.ne.s32.totalorder %s60, %s61
      %p75 = scmp.eq.s32.totalorder %s27, 2
      %p76 = por %p74, %p75
      %p78 = scmp.ne.s32.totalorder %s61, %s77
      %p79 = scmp.eq.s32.totalorder %s27, 0
      %p80 = por %p78, %p79
      %s82 = sadd.s32 %s81, 1
      %p85 = scmp.eq.s32.totalorder %s21, 2
      %p86 = scmp.ne.s32.totalorder %s81, %s83
      %p87 = scmp.eq.s32.totalorder %s21, 0
      %p88 = por %p86, %p87
      %p89 = scmp.ne.s32.totalorder %s81, %s83
      %p90 = scmp.eq.s32.totalorder %s26, 2
      %p91 = por %p89, %p90
      %p92 = scmp.ne.s32.totalorder %s83, %s84
      %p93 = scmp.eq.s32.totalorder %s26, 0
      %p94 = por %p92, %p93
      %p95 = scmp.ne.s32.totalorder %s83, %s84
      %p96 = scmp.eq.s32.totalorder %s27, 2
      %p97 = por %p95, %p96
      %p99 = scmp.ne.s32.totalorder %s84, %s98
      %p100 = scmp.eq.s32.totalorder %s27, 0
      %p101 = por %p99, %p100
      %s103 = sadd.s32 %s102, 1
      %p106 = scmp.eq.s32.totalorder %s21, 2
      %p107 = scmp.ne.s32.totalorder %s102, %s104
      %p108 = scmp.eq.s32.totalorder %s21, 0
      %p109 = por %p107, %p108
      %p110 = scmp.ne.s32.totalorder %s102, %s104
      %p111 = scmp.eq.s32.totalorder %s26, 2
      %p112 = por %p110, %p111
      %p113 = scmp.ne.s32.totalorder %s104, %s105
      %p114 = scmp.eq.s32.totalorder %s26, 0
      %p115 = por %p113, %p114
      %p116 = scmp.ne.s32.totalorder %s104, %s105
      %p117 = scmp.eq.s32.totalorder %s27, 2
      %p118 = por %p116, %p117
      %p120 = scmp.ne.s32.totalorder %s105, %s119
      %p121 = scmp.eq.s32.totalorder %s27, 0
      %p122 = por %p120, %p121
      %s124 = sadd.s32 %s123, 1
      %p127 = scmp.eq.s32.totalorder %s21, 2
      %p128 = scmp.ne.s32.totalorder %s123, %s125
      %p129 = scmp.eq.s32.totalorder %s21, 0
      %p130 = por %p128, %p129
      %p131 = scmp.ne.s32.totalorder %s123, %s125
      %p132 = scmp.eq.s32.totalorder %s26, 2
      %p133 = por %p131, %p132
      %p134 = scmp.ne.s32.totalorder %s125, %s126
      %p135 = scmp.eq.s32.totalorder %s26, 0
      %p136 = por %p134, %p135
      %p137 = scmp.ne.s32.totalorder %s125, %s126
      %p138 = scmp.eq.s32.totalorder %s27, 2
      %p139 = por %p137, %p138
      %p141 = scmp.ne.s32.totalorder %s126, %s140
      %p142 = scmp.eq.s32.totalorder %s27, 0
      %p143 = por %p141, %p142
      %s144 = ssub.s32 %s21, %s28
      %p145 = scmp.eq.s32.totalorder %s144, 0
      %s147 = sadd.s32 %s146, 1
      %s148 = scalar_select %p145, %s146, %s147
      %p151 = pneg %p145
      %p152 = scmp.eq.s32.totalorder %s21, 2
      %p153 = por %p151, %p152
      %p154 = scmp.ne.s32.totalorder %s146, %s149
      %p155 = scmp.eq.s32.totalorder %s21, 0
      %p156 = por %p154, %p155
      %p157 = scmp.ne.s32.totalorder %s146, %s149
      %p158 = scmp.eq.s32.totalorder %s26, 2
      %p159 = por %p157, %p158
      %p160 = scmp.ne.s32.totalorder %s149, %s150
      %p161 = scmp.eq.s32.totalorder %s26, 0
      %p162 = por %p160, %p161
      %p163 = scmp.ne.s32.totalorder %s149, %s150
      %p164 = scmp.eq.s32.totalorder %s27, 2
      %p165 = por %p163, %p164
      %p167 = scmp.ne.s32.totalorder %s150, %s166
      %p168 = scmp.eq.s32.totalorder %s27, 0
      %p169 = por %p167, %p168
      %p170 = scmp.le.s32.totalorder 1, %s21
      %p171 = scmp.lt.s32.totalorder %s21, 4
      %p172 = pnand %p170, %p171
      %p173 = pneg %p172
      // Predicated region
      $region9: #{tpu_custom_call.1} parent=5 // pred_check
        _
      $region10: #{tpu_custom_call.1} parent=5 // pred_check_branch
        %175 = sbr.rel (%p172) target = $region12
      $region11: #{tpu_custom_call.1} parent=5 // pred_region
        %s176 = ssub.s32 %s21, 1
        // Predicated region
        $region13: #{tpu_custom_call.1} parent=11 // pred_check
          %p177 = pneg %p94
        $region14: #{tpu_custom_call.1} parent=11 // pred_check_branch
          %179 = sbr.rel (%p177) target = $region16
        $region15: #{tpu_custom_call.1} parent=11 // pred_region
          %s181 = ssub.s32 10752, 10752
          %182 = vsyncadd [#allocation6], %s181
          %s183 = sshll.u32 [#allocation7], 4
          %s184 = int_to_ptr.vmem [resolvable:$true] %s183
          %189 = dma.hbm_to_vmem [thread:$0]  %s2, 10752, %s184, [#allocation6], 384, 384, 24
        $region16: #{tpu_custom_call.1} parent=11 // pred_fallthru
          _
        // Predicated region
        $region17: #{tpu_custom_call.1} parent=11 // pred_check
          %p190 = pneg %p115
        $region18: #{tpu_custom_call.1} parent=11 // pred_check_branch
          %192 = sbr.rel (%p190) target = $region20
        $region19: #{tpu_custom_call.1} parent=11 // pred_region
          %s194 = ssub.s32 384, 384
          %195 = vsyncadd [#allocation9], %s194
          %s196 = sshll.u32 [#allocation8], 4
          %s197 = int_to_ptr.vmem [resolvable:$true] %s196
          %202 = dma.hbm_to_vmem [thread:$0]  %s3, 384, %s197, [#allocation9], 128, 128, 8
        $region20: #{tpu_custom_call.1} parent=11 // pred_fallthru
          _
        // Predicated region
        $region21: #{tpu_custom_call.1} parent=11 // pred_check
          %p203 = pneg %p136
        $region22: #{tpu_custom_call.1} parent=11 // pred_check_branch
          %205 = sbr.rel (%p203) target = $region24
        $region23: #{tpu_custom_call.1} parent=11 // pred_region
          %s207 = ssub.s32 4096, 4096
          %208 = vsyncadd [#allocation9], %s207
          %s209 = sshll.u32 [#allocation10], 4
          %s210 = int_to_ptr.vmem [resolvable:$true] %s209
          %215 = dma.hbm_to_vmem [thread:$0]  %s4, 4096, %s210, [#allocation9], 128, 128, 8
        $region24: #{tpu_custom_call.1} parent=11 // pred_fallthru
          _
      $region12: #{tpu_custom_call.1} parent=5 // pred_fallthru
        _
      %p216 = scmp.lt.s32.totalorder %s21, 3
      // Predicated region
      $region25: #{tpu_custom_call.1} parent=5 // pred_check
        %p217 = pneg %p216
      $region26: #{tpu_custom_call.1} parent=5 // pred_check_branch
        %219 = sbr.rel (%p217) target = $region28
      $region27: #{tpu_custom_call.1} parent=5 // pred_region
        // Predicated region
        $region29: #{tpu_custom_call.1} parent=27 // pred_check
          %p220 = pneg %p41
        $region30: #{tpu_custom_call.1} parent=27 // pred_check_branch
          %222 = sbr.rel (%p220) target = $region32
        $region31: #{tpu_custom_call.1} parent=27 // pred_region
          %s223 = sand.u32 %s31, 1
          %s224 = scalar_lea.sflag [#allocation3], %s223
          %s225 = sand.u32 %s31, 1
          %s226 = smul.addr %s225, 16
          %s227 = scalar_lea.vmem [#allocation2], %s226
          %s228 = smul.u32 2, %s21
          %s230 = ssub.s32 256, 256
          %231 = vsyncadd %s224, %s230
          %s232 = smul.addr %s228, 2
          %s233 = smul.addr %s232, 64
          %s234 = scalar_lea.hbm %s0, %s233
          %s235 = sshll.u32 %s227, 4
          %s236 = int_to_ptr.vmem [resolvable:$true] %s235
          %241 = dma.hbm_to_vmem [thread:$0]  %s234, 256, %s236, %s224, 128, 128, 8
        $region32: #{tpu_custom_call.1} parent=27 // pred_fallthru
          _
        // Predicated region
        $region33: #{tpu_custom_call.1} parent=27 // pred_check
          %p242 = pneg %p67
        $region34: #{tpu_custom_call.1} parent=27 // pred_check_branch
          %244 = sbr.rel (%p242) target = $region36
        $region35: #{tpu_custom_call.1} parent=27 // pred_region
          %s245 = sand.u32 %s21, 1
          %s246 = scalar_lea.sflag [#allocation6], %s245
          %s247 = sand.u32 %s57, 1
          %s248 = smul.addr %s247, 96
          %s249 = scalar_lea.vmem [#allocation5], %s248
          %s251 = ssub.s32 1536, 1536
          %252 = vsyncadd %s246, %s251
          %s253 = smul.addr %s21, 24
          %s254 = smul.addr %s253, 64
          %s255 = scalar_lea.hbm %s1, %s254
          %s256 = sshll.u32 %s249, 4
          %s257 = int_to_ptr.vmem [resolvable:$true] %s256
          %262 = dma.hbm_to_vmem [thread:$0]  %s255, 1536, %s257, %s246, 64, 64, 4
        $region36: #{tpu_custom_call.1} parent=27 // pred_fallthru
          _
      $region28: #{tpu_custom_call.1} parent=5 // pred_fallthru
        _
      %p263 = scmp.le.s32.totalorder 1, %s21
      %p264 = scmp.lt.s32.totalorder %s21, 4
      %p265 = pnand %p263, %p264
      %p266 = pneg %p265
      // Predicated region
      $region37: #{tpu_custom_call.1} parent=5 // pred_check
        _
      $region38: #{tpu_custom_call.1} parent=5 // pred_check_branch
        %268 = sbr.rel (%p265) target = $region40
      $region39: #{tpu_custom_call.1} parent=5 // pred_region
        %s269 = ssub.s32 %s21, 1
        %s270 = sand.u32 %s34, 1
        %s271 = scalar_lea.sflag [#allocation3], %s270
        %s272 = sand.u32 %s34, 1
        %s273 = smul.addr %s272, 16
        %s274 = scalar_lea.vmem [#allocation2], %s273
        // Predicated region
        $region41: #{tpu_custom_call.1} parent=39 // pred_check
          %p275 = pneg %p47
        $region42: #{tpu_custom_call.1} parent=39 // pred_check_branch
          %277 = sbr.rel (%p275) target = $region44
        $region43: #{tpu_custom_call.1} parent=39 // pred_region
          %278 = dma.done %s271, 256
        $region44: #{tpu_custom_call.1} parent=39 // pred_fallthru
          _
        %s279 = sand.u32 %s26, 1
        %s280 = scalar_lea.sflag [#allocation6], %s279
        %s281 = sand.u32 %s60, 1
        %s282 = smul.addr %s281, 96
        %s283 = scalar_lea.vmem [#allocation5], %s282
        // Predicated region
        $region45: #{tpu_custom_call.1} parent=39 // pred_check
          %p284 = pneg %p73
        $region46: #{tpu_custom_call.1} parent=39 // pred_check_branch
          %286 = sbr.rel (%p284) target = $region48
        $region47: #{tpu_custom_call.1} parent=39 // pred_region
          %287 = dma.done %s280, 1536
        $region48: #{tpu_custom_call.1} parent=39 // pred_fallthru
          _
        // Predicated region
        $region49: #{tpu_custom_call.1} parent=39 // pred_check
          %p288 = pneg %p94
        $region50: #{tpu_custom_call.1} parent=39 // pred_check_branch
          %290 = sbr.rel (%p288) target = $region52
        $region51: #{tpu_custom_call.1} parent=39 // pred_region
          %291 = dma.done [#allocation6], 10752
        $region52: #{tpu_custom_call.1} parent=39 // pred_fallthru
          _
        // Predicated region
        $region53: #{tpu_custom_call.1} parent=39 // pred_check
          %p292 = pneg %p115
        $region54: #{tpu_custom_call.1} parent=39 // pred_check_branch
          %294 = sbr.rel (%p292) target = $region56
        $region55: #{tpu_custom_call.1} parent=39 // pred_region
          %295 = dma.done [#allocation9], 384
        $region56: #{tpu_custom_call.1} parent=39 // pred_fallthru
          _
        // Predicated region
        $region57: #{tpu_custom_call.1} parent=39 // pred_check
          %p296 = pneg %p136
        $region58: #{tpu_custom_call.1} parent=39 // pred_check_branch
          %298 = sbr.rel (%p296) target = $region60
        $region59: #{tpu_custom_call.1} parent=39 // pred_region
          %299 = dma.done [#allocation9], 4096
        $region60: #{tpu_custom_call.1} parent=39 // pred_fallthru
          _
        %s300 = sand.u32 %s34, 1
        %s301 = scalar_lea.sflag [#allocation3], %s300
        %s302 = sand.u32 %s34, 1
        %s303 = smul.addr %s302, 16
        %s304 = scalar_lea.vmem [#allocation2], %s303
        %p305 = pneg %p47
        %p306 = pneg %p44
        %s307 = sand.u32 %s26, 1
        %s308 = scalar_lea.sflag [#allocation6], %s307
        %s309 = sand.u32 %s60, 1
        %s310 = smul.addr %s309, 96
        %s311 = scalar_lea.vmem [#allocation5], %s310
        %p312 = pneg %p73
        %p313 = pneg %p70
        %p314 = pneg %p94
        %p315 = pneg %p91
        %p316 = pneg %p115
        %p317 = pneg %p112
        %p318 = pneg %p136
        %p319 = pneg %p133
        %p320 = pneg %p162
        %p321 = pneg %p159
        %s322 = sand.u32 %s149, 1
        %s323 = scalar_lea.sflag [#allocation4], %s322
        %s324 = sand.u32 %s149, 1
        %s325 = smul.addr %s324, 48
        %s326 = scalar_lea.vmem [#allocation11], %s325
        %s327 = smul.u32 2, %s26
        %s328 = smul.u32 2, %s26
        %v330 = vld [vmem:[%s274] sm:$0xff]
        %v331 = vld [vmem:[%s274 + $0x8] sm:$0xff]
        %v332 = vld [vmem:[#allocation7] sm:$0xff]
        %v333 = vld [vmem:[#allocation7 + $0x8] sm:$0xff]
        %v334 = vld [vmem:[#allocation7 + $0x10] sm:$0xff]
        %v335 = vld [vmem:[#allocation7 + $0x18] sm:$0xff]
        %v336 = vld [vmem:[#allocation7 + $0x20] sm:$0xff]
        %v337 = vld [vmem:[#allocation7 + $0x28] sm:$0xff]
        %v338 = vld [vmem:[#allocation7 + $0x30] sm:$0xff]
        %v339 = vld [vmem:[#allocation7 + $0x38] sm:$0xff]
        %v340 = vld [vmem:[#allocation7 + $0x40] sm:$0xff]
        %v341 = vld [vmem:[#allocation7 + $0x48] sm:$0xff]
        %v342 = vld [vmem:[#allocation7 + $0x50] sm:$0xff]
        %v343 = vld [vmem:[#allocation7 + $0x58] sm:$0xff]
        %v344 = vld [vmem:[#allocation7 + $0x60] sm:$0xff]
        %v345 = vld [vmem:[#allocation7 + $0x68] sm:$0xff]
        %v346 = vld [vmem:[#allocation7 + $0x70] sm:$0xff]
        %v347 = vld [vmem:[#allocation7 + $0x78] sm:$0xff]
        %v348 = vld [vmem:[#allocation7 + $0x80] sm:$0xff]
        %v349 = vld [vmem:[#allocation7 + $0x88] sm:$0xff]
        %v350 = vld [vmem:[#allocation7 + $0x90] sm:$0xff]
        %v351 = vld [vmem:[#allocation7 + $0x98] sm:$0xff]
        %v352 = vld [vmem:[#allocation7 + $0xa0] sm:$0xff]
        %v353 = vld [vmem:[#allocation7 + $0xa8] sm:$0xff]
        %v354 = vld [vmem:[#allocation7 + $0xb0] sm:$0xff]
        %v355 = vld [vmem:[#allocation7 + $0xb8] sm:$0xff]
        %v356 = vld [vmem:[#allocation7 + $0xc0] sm:$0xff]
        %v357 = vld [vmem:[#allocation7 + $0xc8] sm:$0xff]
        %v358 = vld [vmem:[#allocation7 + $0xd0] sm:$0xff]
        %v359 = vld [vmem:[#allocation7 + $0xd8] sm:$0xff]
        %v360 = vld [vmem:[#allocation7 + $0xe0] sm:$0xff]
        %v361 = vld [vmem:[#allocation7 + $0xe8] sm:$0xff]
        %v362 = vld [vmem:[#allocation7 + $0xf0] sm:$0xff]
        %v363 = vld [vmem:[#allocation7 + $0xf8] sm:$0xff]
        %v364 = vld [vmem:[#allocation7 + $0x100] sm:$0xff]
        %v365 = vld [vmem:[#allocation7 + $0x108] sm:$0xff]
        %v366 = vld [vmem:[#allocation7 + $0x110] sm:$0xff]
        %v367 = vld [vmem:[#allocation7 + $0x118] sm:$0xff]
        %v368 = vld [vmem:[#allocation7 + $0x120] sm:$0xff]
        %v369 = vld [vmem:[#allocation7 + $0x128] sm:$0xff]
        %v370 = vld [vmem:[#allocation7 + $0x130] sm:$0xff]
        %v371 = vld [vmem:[#allocation7 + $0x138] sm:$0xff]
        %v372 = vld [vmem:[#allocation7 + $0x140] sm:$0xff]
        %v373 = vld [vmem:[#allocation7 + $0x148] sm:$0xff]
        %v374 = vld [vmem:[#allocation7 + $0x150] sm:$0xff]
        %v375 = vld [vmem:[#allocation7 + $0x158] sm:$0xff]
        %v376 = vld [vmem:[#allocation7 + $0x160] sm:$0xff]
        %v377 = vld [vmem:[#allocation7 + $0x168] sm:$0xff]
        %v378 = vld [vmem:[#allocation7 + $0x170] sm:$0xff]
        %v379 = vld [vmem:[#allocation7 + $0x178] sm:$0xff]
        %v380 = vld [vmem:[#allocation7 + $0x180] sm:$0xff]
        %v381 = vld [vmem:[#allocation7 + $0x188] sm:$0xff]
        %v382 = vld [vmem:[#allocation7 + $0x190] sm:$0xff]
        %v383 = vld [vmem:[#allocation7 + $0x198] sm:$0xff]
        %v384 = vld [vmem:[#allocation7 + $0x1a0] sm:$0xff]
        %v385 = vld [vmem:[#allocation7 + $0x1a8] sm:$0xff]
        %v386 = vld [vmem:[#allocation7 + $0x1b0] sm:$0xff]
        %v387 = vld [vmem:[#allocation7 + $0x1b8] sm:$0xff]
        %v388 = vld [vmem:[#allocation7 + $0x1c0] sm:$0xff]
        %v389 = vld [vmem:[#allocation7 + $0x1c8] sm:$0xff]
        %v390 = vld [vmem:[#allocation7 + $0x1d0] sm:$0xff]
        %v391 = vld [vmem:[#allocation7 + $0x1d8] sm:$0xff]
        %v392 = vld [vmem:[#allocation7 + $0x1e0] sm:$0xff]
        %v393 = vld [vmem:[#allocation7 + $0x1e8] sm:$0xff]
        %v394 = vld [vmem:[#allocation7 + $0x1f0] sm:$0xff]
        %v395 = vld [vmem:[#allocation7 + $0x1f8] sm:$0xff]
        %v396 = vld [vmem:[#allocation7 + $0x200] sm:$0xff]
        %v397 = vld [vmem:[#allocation7 + $0x208] sm:$0xff]
        %v398 = vld [vmem:[#allocation7 + $0x210] sm:$0xff]
        %v399 = vld [vmem:[#allocation7 + $0x218] sm:$0xff]
        %v400 = vld [vmem:[#allocation7 + $0x220] sm:$0xff]
        %v401 = vld [vmem:[#allocation7 + $0x228] sm:$0xff]
        %v402 = vld [vmem:[#allocation7 + $0x230] sm:$0xff]
        %v403 = vld [vmem:[#allocation7 + $0x238] sm:$0xff]
        %v404 = vld [vmem:[#allocation7 + $0x240] sm:$0xff]
        %v405 = vld [vmem:[#allocation7 + $0x248] sm:$0xff]
        %v406 = vld [vmem:[#allocation7 + $0x250] sm:$0xff]
        %v407 = vld [vmem:[#allocation7 + $0x258] sm:$0xff]
        %v408 = vld [vmem:[#allocation7 + $0x260] sm:$0xff]
        %v409 = vld [vmem:[#allocation7 + $0x268] sm:$0xff]
        %v410 = vld [vmem:[#allocation7 + $0x270] sm:$0xff]
        %v411 = vld [vmem:[#allocation7 + $0x278] sm:$0xff]
        %v412 = vld [vmem:[#allocation7 + $0x280] sm:$0xff]
        %v413 = vld [vmem:[#allocation7 + $0x288] sm:$0x11]
        %v414 = vld [vmem:[#allocation7 + $0x290] sm:$0x11]
        %v415 = vld [vmem:[#allocation7 + $0x298] sm:$0x11]
        %v418 = vunpack.c.l.b16 %v330
        %v419 = vunpack.c.h.b16 %v330
        %v420 = vunpack.c.l.b16 %v331
        %v421 = vunpack.c.h.b16 %v331
        %v422 = vpack.c.b16 %v420, %v418
        %v423 = vpack.c.b16 %v421, %v419
        %v509 = vunpack.c.l.b16 %v332
        %v510 = vunpack.c.h.b16 %v332
        %v511 = vunpack.c.l.b16 %v333
        %v512 = vunpack.c.h.b16 %v333
        %v513 = vunpack.c.l.b16 %v334
        %v514 = vunpack.c.h.b16 %v334
        %v515 = vunpack.c.l.b16 %v335
        %v516 = vunpack.c.h.b16 %v335
        %v517 = vunpack.c.l.b16 %v336
        %v518 = vunpack.c.h.b16 %v336
        %v519 = vunpack.c.l.b16 %v337
        %v520 = vunpack.c.h.b16 %v337
        %v521 = vunpack.c.l.b16 %v338
        %v522 = vunpack.c.h.b16 %v338
        %v523 = vunpack.c.l.b16 %v339
        %v524 = vunpack.c.h.b16 %v339
        %v525 = vunpack.c.l.b16 %v340
        %v526 = vunpack.c.h.b16 %v340
        %v527 = vunpack.c.l.b16 %v341
        %v528 = vunpack.c.h.b16 %v341
        %v529 = vunpack.c.l.b16 %v342
        %v530 = vunpack.c.h.b16 %v342
        %v531 = vunpack.c.l.b16 %v343
        %v532 = vunpack.c.h.b16 %v343
        %v533 = vunpack.c.l.b16 %v344
        %v534 = vunpack.c.h.b16 %v344
        %v535 = vunpack.c.l.b16 %v345
        %v536 = vunpack.c.h.b16 %v345
        %v537 = vunpack.c.l.b16 %v346
        %v538 = vunpack.c.h.b16 %v346
        %v539 = vunpack.c.l.b16 %v347
        %v540 = vunpack.c.h.b16 %v347
        %v541 = vunpack.c.l.b16 %v348
        %v542 = vunpack.c.h.b16 %v348
        %v543 = vunpack.c.l.b16 %v349
        %v544 = vunpack.c.h.b16 %v349
        %v545 = vunpack.c.l.b16 %v350
        %v546 = vunpack.c.h.b16 %v350
        %v547 = vunpack.c.l.b16 %v351
        %v548 = vunpack.c.h.b16 %v351
        %v549 = vunpack.c.l.b16 %v352
        %v550 = vunpack.c.h.b16 %v352
        %v551 = vunpack.c.l.b16 %v353
        %v552 = vunpack.c.h.b16 %v353
        %v553 = vunpack.c.l.b16 %v354
        %v554 = vunpack.c.h.b16 %v354
        %v555 = vunpack.c.l.b16 %v355
        %v556 = vunpack.c.h.b16 %v355
        %v557 = vunpack.c.l.b16 %v356
        %v558 = vunpack.c.h.b16 %v356
        %v559 = vunpack.c.l.b16 %v357
        %v560 = vunpack.c.h.b16 %v357
        %v561 = vunpack.c.l.b16 %v358
        %v562 = vunpack.c.h.b16 %v358
        %v563 = vunpack.c.l.b16 %v359
        %v564 = vunpack.c.h.b16 %v359
        %v565 = vunpack.c.l.b16 %v360
        %v566 = vunpack.c.h.b16 %v360
        %v567 = vunpack.c.l.b16 %v361
        %v568 = vunpack.c.h.b16 %v361
        %v569 = vunpack.c.l.b16 %v362
        %v570 = vunpack.c.h.b16 %v362
        %v571 = vunpack.c.l.b16 %v363
        %v572 = vunpack.c.h.b16 %v363
        %v573 = vunpack.c.l.b16 %v364
        %v574 = vunpack.c.h.b16 %v364
        %v575 = vunpack.c.l.b16 %v365
        %v576 = vunpack.c.h.b16 %v365
        %v577 = vunpack.c.l.b16 %v366
        %v578 = vunpack.c.h.b16 %v366
        %v579 = vunpack.c.l.b16 %v367
        %v580 = vunpack.c.h.b16 %v367
        %v581 = vunpack.c.l.b16 %v368
        %v582 = vunpack.c.h.b16 %v368
        %v583 = vunpack.c.l.b16 %v369
        %v584 = vunpack.c.h.b16 %v369
        %v585 = vunpack.c.l.b16 %v370
        %v586 = vunpack.c.h.b16 %v370
        %v587 = vunpack.c.l.b16 %v371
        %v588 = vunpack.c.h.b16 %v371
        %v589 = vunpack.c.l.b16 %v372
        %v590 = vunpack.c.h.b16 %v372
        %v591 = vunpack.c.l.b16 %v373
        %v592 = vunpack.c.h.b16 %v373
        %v593 = vunpack.c.l.b16 %v374
        %v594 = vunpack.c.h.b16 %v374
        %v595 = vunpack.c.l.b16 %v375
        %v596 = vunpack.c.h.b16 %v375
        %v597 = vunpack.c.l.b16 %v376
        %v598 = vunpack.c.h.b16 %v376
        %v599 = vunpack.c.l.b16 %v377
        %v600 = vunpack.c.h.b16 %v377
        %v601 = vunpack.c.l.b16 %v378
        %v602 = vunpack.c.h.b16 %v378
        %v603 = vunpack.c.l.b16 %v379
        %v604 = vunpack.c.h.b16 %v379
        %v605 = vunpack.c.l.b16 %v380
        %v606 = vunpack.c.h.b16 %v380
        %v607 = vunpack.c.l.b16 %v381
        %v608 = vunpack.c.h.b16 %v381
        %v609 = vunpack.c.l.b16 %v382
        %v610 = vunpack.c.h.b16 %v382
        %v611 = vunpack.c.l.b16 %v383
        %v612 = vunpack.c.h.b16 %v383
        %v613 = vunpack.c.l.b16 %v384
        %v614 = vunpack.c.h.b16 %v384
        %v615 = vunpack.c.l.b16 %v385
        %v616 = vunpack.c.h.b16 %v385
        %v617 = vunpack.c.l.b16 %v386
        %v618 = vunpack.c.h.b16 %v386
        %v619 = vunpack.c.l.b16 %v387
        %v620 = vunpack.c.h.b16 %v387
        %v621 = vunpack.c.l.b16 %v388
        %v622 = vunpack.c.h.b16 %v388
        %v623 = vunpack.c.l.b16 %v389
        %v624 = vunpack.c.h.b16 %v389
        %v625 = vunpack.c.l.b16 %v390
        %v626 = vunpack.c.h.b16 %v390
        %v627 = vunpack.c.l.b16 %v391
        %v628 = vunpack.c.h.b16 %v391
        %v629 = vunpack.c.l.b16 %v392
        %v630 = vunpack.c.h.b16 %v392
        %v631 = vunpack.c.l.b16 %v393
        %v632 = vunpack.c.h.b16 %v393
        %v633 = vunpack.c.l.b16 %v394
        %v634 = vunpack.c.h.b16 %v394
        %v635 = vunpack.c.l.b16 %v395
        %v636 = vunpack.c.h.b16 %v395
        %v637 = vunpack.c.l.b16 %v396
        %v638 = vunpack.c.h.b16 %v396
        %v639 = vunpack.c.l.b16 %v397
        %v640 = vunpack.c.h.b16 %v397
        %v641 = vunpack.c.l.b16 %v398
        %v642 = vunpack.c.h.b16 %v398
        %v643 = vunpack.c.l.b16 %v399
        %v644 = vunpack.c.h.b16 %v399
        %v645 = vunpack.c.l.b16 %v400
        %v646 = vunpack.c.h.b16 %v400
        %v647 = vunpack.c.l.b16 %v401
        %v648 = vunpack.c.h.b16 %v401
        %v649 = vunpack.c.l.b16 %v402
        %v650 = vunpack.c.h.b16 %v402
        %v651 = vunpack.c.l.b16 %v403
        %v652 = vunpack.c.h.b16 %v403
        %v653 = vunpack.c.l.b16 %v404
        %v654 = vunpack.c.h.b16 %v404
        %v655 = vunpack.c.l.b16 %v405
        %v656 = vunpack.c.h.b16 %v405
        %v657 = vunpack.c.l.b16 %v406
        %v658 = vunpack.c.h.b16 %v406
        %v659 = vunpack.c.l.b16 %v407
        %v660 = vunpack.c.h.b16 %v407
        %v661 = vunpack.c.l.b16 %v408
        %v662 = vunpack.c.h.b16 %v408
        %v663 = vunpack.c.l.b16 %v409
        %v664 = vunpack.c.h.b16 %v409
        %v665 = vunpack.c.l.b16 %v410
        %v666 = vunpack.c.h.b16 %v410
        %v667 = vunpack.c.l.b16 %v411
        %v668 = vunpack.c.h.b16 %v411
        %v669 = vunpack.c.l.b16 %v412
        %v670 = vunpack.c.h.b16 %v412
        %v671 = vunpack.c.l.b16 %v413
        %v672 = vunpack.c.h.b16 %v413
        %v673 = vunpack.c.l.b16 %v414
        %v674 = vunpack.c.h.b16 %v414
        %v675 = vunpack.c.l.b16 %v415
        %v676 = vunpack.c.h.b16 %v415
        %v677 = vpack.c.b16 %v515, %v509
        %v678 = vpack.c.b16 %v516, %v510
        %v679 = vpack.c.b16 %v517, %v511
        %v680 = vpack.c.b16 %v518, %v512
        %v681 = vpack.c.b16 %v519, %v513
        %v682 = vpack.c.b16 %v520, %v514
        %v683 = vpack.c.b16 %v527, %v521
        %v684 = vpack.c.b16 %v528, %v522
        %v685 = vpack.c.b16 %v529, %v523
        %v686 = vpack.c.b16 %v530, %v524
        %v687 = vpack.c.b16 %v531, %v525
        %v688 = vpack.c.b16 %v532, %v526
        %v689 = vpack.c.b16 %v539, %v533
        %v690 = vpack.c.b16 %v540, %v534
        %v691 = vpack.c.b16 %v541, %v535
        %v692 = vpack.c.b16 %v542, %v536
        %v693 = vpack.c.b16 %v543, %v537
        %v694 = vpack.c.b16 %v544, %v538
        %v695 = vpack.c.b16 %v551, %v545
        %v696 = vpack.c.b16 %v552, %v546
        %v697 = vpack.c.b16 %v553, %v547
        %v698 = vpack.c.b16 %v554, %v548
        %v699 = vpack.c.b16 %v555, %v549
        %v700 = vpack.c.b16 %v556, %v550
        %v701 = vpack.c.b16 %v563, %v557
        %v702 = vpack.c.b16 %v564, %v558
        %v703 = vpack.c.b16 %v565, %v559
        %v704 = vpack.c.b16 %v566, %v560
        %v705 = vpack.c.b16 %v567, %v561
        %v706 = vpack.c.b16 %v568, %v562
        %v707 = vpack.c.b16 %v575, %v569
        %v708 = vpack.c.b16 %v576, %v570
        %v709 = vpack.c.b16 %v577, %v571
        %v710 = vpack.c.b16 %v578, %v572
        %v711 = vpack.c.b16 %v579, %v573
        %v712 = vpack.c.b16 %v580, %v574
        %v713 = vpack.c.b16 %v587, %v581
        %v714 = vpack.c.b16 %v588, %v582
        %v715 = vpack.c.b16 %v589, %v583
        %v716 = vpack.c.b16 %v590, %v584
        %v717 = vpack.c.b16 %v591, %v585
        %v718 = vpack.c.b16 %v592, %v586
        %v719 = vpack.c.b16 %v599, %v593
        %v720 = vpack.c.b16 %v600, %v594
        %v721 = vpack.c.b16 %v601, %v595
        %v722 = vpack.c.b16 %v602, %v596
        %v723 = vpack.c.b16 %v603, %v597
        %v724 = vpack.c.b16 %v604, %v598
        %v725 = vpack.c.b16 %v611, %v605
        %v726 = vpack.c.b16 %v612, %v606
        %v727 = vpack.c.b16 %v613, %v607
        %v728 = vpack.c.b16 %v614, %v608
        %v729 = vpack.c.b16 %v615, %v609
        %v730 = vpack.c.b16 %v616, %v610
        %v731 = vpack.c.b16 %v623, %v617
        %v732 = vpack.c.b16 %v624, %v618
        %v733 = vpack.c.b16 %v625, %v619
        %v734 = vpack.c.b16 %v626, %v620
        %v735 = vpack.c.b16 %v627, %v621
        %v736 = vpack.c.b16 %v628, %v622
        %v737 = vpack.c.b16 %v635, %v629
        %v738 = vpack.c.b16 %v636, %v630
        %v739 = vpack.c.b16 %v637, %v631
        %v740 = vpack.c.b16 %v638, %v632
        %v741 = vpack.c.b16 %v639, %v633
        %v742 = vpack.c.b16 %v640, %v634
        %v743 = vpack.c.b16 %v647, %v641
        %v744 = vpack.c.b16 %v648, %v642
        %v745 = vpack.c.b16 %v649, %v643
        %v746 = vpack.c.b16 %v650, %v644
        %v747 = vpack.c.b16 %v651, %v645
        %v748 = vpack.c.b16 %v652, %v646
        %v749 = vpack.c.b16 %v659, %v653
        %v750 = vpack.c.b16 %v660, %v654
        %v751 = vpack.c.b16 %v661, %v655
        %v752 = vpack.c.b16 %v662, %v656
        %v753 = vpack.c.b16 %v663, %v657
        %v754 = vpack.c.b16 %v664, %v658
        %v755 = vpack.c.b16 %v671, %v665
        %v756 = vpack.c.b16 %v672, %v666
        %v757 = vpack.c.b16 %v673, %v667
        %v758 = vpack.c.b16 %v674, %v668
        %v759 = vpack.c.b16 %v675, %v669
        %v760 = vpack.c.b16 %v676, %v670
        %vm839 = vcmask 736256
        %v841 = vsel %vm839, %v423, 0
        %vm843 = vcmask 1044480
        %v845 = vsel %vm843, %v755, 0
        %v848 = vsel %vm843, %v756, 0
        %v851 = vsel %vm843, %v757, 0
        %v854 = vsel %vm843, %v758, 0
        %v857 = vsel %vm843, %v759, 0
        %v860 = vsel %vm843, %v760, 0
        %862 = vmatprep.subr.bf16.mxu0 %v678
        %863 = vmatpush1.bf16.msra.mxu0 %v677
        %864 = vmatprep.subr.bf16.mxu0 %v684
        %865 = vmatpush1.bf16.msra.mxu0 %v683
        %866 = vmatprep.subr.bf16.mxu0 %v690
        %867 = vmatpush1.bf16.msra.mxu0 %v689
        %868 = vmatprep.subr.bf16.mxu0 %v696
        %869 = vmatpush1.bf16.msra.mxu0 %v695
        %870 = vmatprep.subr.bf16.mxu0 %v702
        %871 = vmatpush1.bf16.msra.mxu0 %v701
        %872 = vmatprep.subr.bf16.mxu0 %v708
        %873 = vmatpush1.bf16.msra.mxu0 %v707
        %874 = vmatprep.subr.bf16.mxu0 %v714
        %875 = vmatpush1.bf16.msra.mxu0 %v713
        %876 = vmatprep.subr.bf16.mxu0 %v720
        %877 = vmatpush1.bf16.msra.mxu0 %v719
        %878 = vmatprep.subr.bf16.mxu0 %v726
        %879 = vmatpush1.bf16.msra.mxu0 %v725
        %880 = vmatprep.subr.bf16.mxu0 %v732
        %881 = vmatpush1.bf16.msra.mxu0 %v731
        %882 = vmatprep.subr.bf16.mxu0 %v738
        %883 = vmatpush1.bf16.msra.mxu0 %v737
        %884 = vmatprep.subr.bf16.mxu0 %v744
        %885 = vmatpush1.bf16.msra.mxu0 %v743
        %886 = vmatprep.subr.bf16.mxu0 %v750
        %887 = vmatpush1.bf16.msra.mxu0 %v749
        %888 = vmatprep.subr.bf16.mxu0 %v848
        %889 = vmatpush1.bf16.msra.mxu0 %v845
        %890 = vmatprep.subr.bf16.mxu0 0
        %891 = vmatpush1.bf16.msra.mxu0 0
        %892 = vmatprep.subr.bf16.mxu0 0
        %893 = vmatpush1.bf16.msra.mxu0 0
        %894 = vmatprep.mubr.bf16.mxu0 %v841
        %895 = vmatmul.mubr.bf16.gmra.mrb[0].mxu0 %v422
        %v896 = vpop.f32.mrb[0].mxu0
        %v897 = vadd.f32 0.0, %v896
        %v898 = vpop.f32.mrb[0].mxu0
        %v899 = vadd.f32 0.0, %v898
        %v900 = vpop.f32.mrb[0].mxu0
        %v901 = vadd.f32 0.0, %v900
        %v902 = vpop.f32.mrb[0].mxu0
        %v903 = vadd.f32 0.0, %v902
        %904 = vdwg.mxu0
        %905 = vmatprep.subr.bf16.mxu0 %v680
        %906 = vmatpush1.bf16.msra.mxu0 %v679
        %907 = vmatprep.subr.bf16.mxu0 %v686
        %908 = vmatpush1.bf16.msra.mxu0 %v685
        %909 = vmatprep.subr.bf16.mxu0 %v692
        %910 = vmatpush1.bf16.msra.mxu0 %v691
        %911 = vmatprep.subr.bf16.mxu0 %v698
        %912 = vmatpush1.bf16.msra.mxu0 %v697
        %913 = vmatprep.subr.bf16.mxu0 %v704
        %914 = vmatpush1.bf16.msra.mxu0 %v703
        %915 = vmatprep.subr.bf16.mxu0 %v710
        %916 = vmatpush1.bf16.msra.mxu0 %v709
        %917 = vmatprep.subr.bf16.mxu0 %v716
        %918 = vmatpush1.bf16.msra.mxu0 %v715
        %919 = vmatprep.subr.bf16.mxu0 %v722
        %920 = vmatpush1.bf16.msra.mxu0 %v721
        %921 = vmatprep.subr.bf16.mxu0 %v728
        %922 = vmatpush1.bf16.msra.mxu0 %v727
        %923 = vmatprep.subr.bf16.mxu0 %v734
        %924 = vmatpush1.bf16.msra.mxu0 %v733
        %925 = vmatprep.subr.bf16.mxu0 %v740
        %926 = vmatpush1.bf16.msra.mxu0 %v739
        %927 = vmatprep.subr.bf16.mxu0 %v746
        %928 = vmatpush1.bf16.msra.mxu0 %v745
        %929 = vmatprep.subr.bf16.mxu0 %v752
        %930 = vmatpush1.bf16.msra.mxu0 %v751
        %931 = vmatprep.subr.bf16.mxu0 %v854
        %932 = vmatpush1.bf16.msra.mxu0 %v851
        %933 = vmatprep.subr.bf16.mxu0 0
        %934 = vmatpush1.bf16.msra.mxu0 0
        %935 = vmatprep.subr.bf16.mxu0 0
        %936 = vmatpush1.bf16.msra.mxu0 0
        %937 = vmatprep.mubr.bf16.mxu0 %v841
        %938 = vmatmul.mubr.bf16.gmra.mrb[0].mxu0 %v422
        %v939 = vpop.f32.mrb[0].mxu0
        %v940 = vadd.f32 0.0, %v939
        %v941 = vpop.f32.mrb[0].mxu0
        %v942 = vadd.f32 0.0, %v941
        %v943 = vpop.f32.mrb[0].mxu0
        %v944 = vadd.f32 0.0, %v943
        %v945 = vpop.f32.mrb[0].mxu0
        %v946 = vadd.f32 0.0, %v945
        %947 = vdwg.mxu0
        %948 = vmatprep.subr.bf16.mxu0 %v682
        %949 = vmatpush1.bf16.msra.mxu0 %v681
        %950 = vmatprep.subr.bf16.mxu0 %v688
        %951 = vmatpush1.bf16.msra.mxu0 %v687
        %952 = vmatprep.subr.bf16.mxu0 %v694
        %953 = vmatpush1.bf16.msra.mxu0 %v693
        %954 = vmatprep.subr.bf16.mxu0 %v700
        %955 = vmatpush1.bf16.msra.mxu0 %v699
        %956 = vmatprep.subr.bf16.mxu0 %v706
        %957 = vmatpush1.bf16.msra.mxu0 %v705
        %958 = vmatprep.subr.bf16.mxu0 %v712
        %959 = vmatpush1.bf16.msra.mxu0 %v711
        %960 = vmatprep.subr.bf16.mxu0 %v718
        %961 = vmatpush1.bf16.msra.mxu0 %v717
        %962 = vmatprep.subr.bf16.mxu0 %v724
        %963 = vmatpush1.bf16.msra.mxu0 %v723
        %964 = vmatprep.subr.bf16.mxu0 %v730
        %965 = vmatpush1.bf16.msra.mxu0 %v729
        %966 = vmatprep.subr.bf16.mxu0 %v736
        %967 = vmatpush1.bf16.msra.mxu0 %v735
        %968 = vmatprep.subr.bf16.mxu0 %v742
        %969 = vmatpush1.bf16.msra.mxu0 %v741
        %970 = vmatprep.subr.bf16.mxu0 %v748
        %971 = vmatpush1.bf16.msra.mxu0 %v747
        %972 = vmatprep.subr.bf16.mxu0 %v754
        %973 = vmatpush1.bf16.msra.mxu0 %v753
        %974 = vmatprep.subr.bf16.mxu0 %v860
        %975 = vmatpush1.bf16.msra.mxu0 %v857
        %976 = vmatprep.subr.bf16.mxu0 0
        %977 = vmatpush1.bf16.msra.mxu0 0
        %978 = vmatprep.subr.bf16.mxu0 0
        %979 = vmatpush1.bf16.msra.mxu0 0
        %980 = vmatprep.mubr.bf16.mxu0 %v841
        %981 = vmatmul.mubr.bf16.gmra.mrb[0].mxu0 %v422
        %v982 = vpop.f32.mrb[0].mxu0
        %v983 = vadd.f32 0.0, %v982
        %v984 = vpop.f32.mrb[0].mxu0
        %v985 = vadd.f32 0.0, %v984
        %v986 = vpop.f32.mrb[0].mxu0
        %v987 = vadd.f32 0.0, %v986
        %v988 = vpop.f32.mrb[0].mxu0
        %v989 = vadd.f32 0.0, %v988
        %990 = vdwg.mxu0
        %v991 = vld [vmem:[%s283] sm:$0xf]
        %v992 = vld [vmem:[%s283 + $0x4] sm:$0xf]
        %v993 = vld [vmem:[%s283 + $0x8] sm:$0xf]
        %v994 = vld [vmem:[%s283 + $0xc] sm:$0xf]
        %v995 = vld [vmem:[%s283 + $0x10] sm:$0xf]
        %v996 = vld [vmem:[%s283 + $0x14] sm:$0xf]
        %v997 = vld [vmem:[%s283 + $0x18] sm:$0xf]
        %v998 = vld [vmem:[%s283 + $0x1c] sm:$0xf]
        %v999 = vld [vmem:[%s283 + $0x20] sm:$0xf]
        %v1000 = vld [vmem:[%s283 + $0x24] sm:$0xf]
        %v1001 = vld [vmem:[%s283 + $0x28] sm:$0xf]
        %v1002 = vld [vmem:[%s283 + $0x2c] sm:$0xf]
        %v1003 = vld [vmem:[%s283 + $0x30] sm:$0xf]
        %v1004 = vld [vmem:[%s283 + $0x34] sm:$0xf]
        %v1005 = vld [vmem:[%s283 + $0x38] sm:$0xf]
        %v1006 = vld [vmem:[%s283 + $0x3c] sm:$0xf]
        %v1007 = vld [vmem:[%s283 + $0x40] sm:$0xf]
        %v1008 = vld [vmem:[%s283 + $0x44] sm:$0xf]
        %v1009 = vld [vmem:[%s283 + $0x48] sm:$0xf]
        %v1010 = vld [vmem:[%s283 + $0x4c] sm:$0xf]
        %v1011 = vld [vmem:[%s283 + $0x50] sm:$0xf]
        %v1012 = vld [vmem:[%s283 + $0x54] sm:$0xf]
        %v1013 = vld [vmem:[%s283 + $0x58] sm:$0xf]
        %v1014 = vld [vmem:[%s283 + $0x5c] sm:$0xf]
        %v1015 = vld [vmem:[#allocation8] sm:$0xff]
        %v1016 = vld [vmem:[#allocation8 + $0x8] sm:$0xff]
        %v1017 = vld [vmem:[#allocation8 + $0x10] sm:$0xff]
        %v1042 = vunpack.c.l.b16 %v991
        %v1043 = vunpack.c.l.b16 %v992
        %v1044 = vunpack.c.l.b16 %v993
        %v1045 = vunpack.c.l.b16 %v994
        %v1046 = vunpack.c.l.b16 %v995
        %v1047 = vunpack.c.l.b16 %v996
        %v1048 = vunpack.c.l.b16 %v997
        %v1049 = vunpack.c.l.b16 %v998
        %v1050 = vunpack.c.l.b16 %v999
        %v1051 = vunpack.c.l.b16 %v1000
        %v1052 = vunpack.c.l.b16 %v1001
        %v1053 = vunpack.c.l.b16 %v1002
        %v1054 = vunpack.c.l.b16 %v1003
        %v1055 = vunpack.c.l.b16 %v1004
        %v1056 = vunpack.c.l.b16 %v1005
        %v1057 = vunpack.c.l.b16 %v1006
        %v1058 = vunpack.c.l.b16 %v1007
        %v1059 = vunpack.c.l.b16 %v1008
        %v1060 = vunpack.c.l.b16 %v1009
        %v1061 = vunpack.c.l.b16 %v1010
        %v1062 = vunpack.c.l.b16 %v1011
        %v1063 = vunpack.c.l.b16 %v1012
        %v1064 = vunpack.c.l.b16 %v1013
        %v1065 = vunpack.c.l.b16 %v1014
        %v1066 = vpack.c.b16 %v1043, %v1042
        %v1067 = vpack.c.b16 %v1045, %v1044
        %v1068 = vpack.c.b16 %v1047, %v1046
        %v1069 = vpack.c.b16 %v1049, %v1048
        %v1070 = vpack.c.b16 %v1051, %v1050
        %v1071 = vpack.c.b16 %v1053, %v1052
        %v1072 = vpack.c.b16 %v1055, %v1054
        %v1073 = vpack.c.b16 %v1057, %v1056
        %v1074 = vpack.c.b16 %v1059, %v1058
        %v1075 = vpack.c.b16 %v1061, %v1060
        %v1076 = vpack.c.b16 %v1063, %v1062
        %v1077 = vpack.c.b16 %v1065, %v1064
        %v1081 = vunpack.c.l.b16 %v1015
        %v1082 = vunpack.c.h.b16 %v1015
        %v1083 = vunpack.c.l.b16 %v1016
        %v1084 = vunpack.c.h.b16 %v1016
        %v1085 = vunpack.c.l.b16 %v1017
        %v1086 = vunpack.c.h.b16 %v1017
        %v1087 = vpack.c.b16 %v1083, %v1081
        %v1088 = vpack.c.b16 %v1084, %v1082
        %v1089 = vpack.c.b16 %v1085, %v1085
        %v1090 = vpack.c.b16 %v1086, %v1086
        %vm1093 = vcmask 195584
        %v1095 = vsel %vm1093, %v1066, 0
        %v1098 = vsel %vm1093, %v1067, 0
        %v1101 = vsel %vm1093, %v1068, 0
        %v1104 = vsel %vm1093, %v1069, 0
        %v1107 = vsel %vm1093, %v1070, 0
        %v1110 = vsel %vm1093, %v1071, 0
        %v1113 = vsel %vm1093, %v1072, 0
        %v1116 = vsel %vm1093, %v1073, 0
        %v1119 = vsel %vm1093, %v1074, 0
        %v1122 = vsel %vm1093, %v1075, 0
        %v1125 = vsel %vm1093, %v1076, 0
        %v1128 = vsel %vm1093, %v1077, 0
        %vm1130 = vcmask 1043456
        %v1132 = vsel %vm1130, %v1089, 0
        %v1135 = vsel %vm1130, %v1090, 0
        %1137 = vmatprep.subr.bf16.mxu0 %v1088
        %1138 = vmatpush1.bf16.msra.mxu0 %v1087
        %1139 = vmatprep.subr.bf16.mxu0 %v1135
        %1140 = vmatpush1.bf16.msra.mxu0 %v1132
        %1141 = vmatprep.subr.bf16.mxu0 0
        %1142 = vmatpush1.bf16.msra.mxu0 0
        %1143 = vmatprep.subr.bf16.mxu0 0
        %1144 = vmatpush1.bf16.msra.mxu0 0
        %1145 = vmatprep.subr.bf16.mxu0 0
        %1146 = vmatpush1.bf16.msra.mxu0 0
        %1147 = vmatprep.subr.bf16.mxu0 0
        %1148 = vmatpush1.bf16.msra.mxu0 0
        %1149 = vmatprep.subr.bf16.mxu0 0
        %1150 = vmatpush1.bf16.msra.mxu0 0
        %1151 = vmatprep.subr.bf16.mxu0 0
        %1152 = vmatpush1.bf16.msra.mxu0 0
        %1153 = vmatprep.subr.bf16.mxu0 0
        %1154 = vmatpush1.bf16.msra.mxu0 0
        %1155 = vmatprep.subr.bf16.mxu0 0
        %1156 = vmatpush1.bf16.msra.mxu0 0
        %1157 = vmatprep.subr.bf16.mxu0 0
        %1158 = vmatpush1.bf16.msra.mxu0 0
        %1159 = vmatprep.subr.bf16.mxu0 0
        %1160 = vmatpush1.bf16.msra.mxu0 0
        %1161 = vmatprep.subr.bf16.mxu0 0
        %1162 = vmatpush1.bf16.msra.mxu0 0
        %1163 = vmatprep.subr.bf16.mxu0 0
        %1164 = vmatpush1.bf16.msra.mxu0 0
        %1165 = vmatprep.subr.bf16.mxu0 0
        %1166 = vmatpush1.bf16.msra.mxu0 0
        %1167 = vmatprep.subr.bf16.mxu0 0
        %1168 = vmatpush1.bf16.msra.mxu0 0
        %1169 = vmatprep.mubr.bf16.mxu0 0
        %1170 = vmatmul.mubr.bf16.gmra.mrb[0].mxu0 %v1095
        %v1171 = vpop.f32.mrb[0].mxu0
        %v1172 = vadd.f32 0.0, %v1171
        %v1173 = vpop.f32.mrb[0].mxu0
        %v1174 = vadd.f32 0.0, %v1173
        %v1175 = vpop.f32.mrb[0].mxu0
        %v1176 = vadd.f32 0.0, %v1175
        %v1177 = vpop.f32.mrb[0].mxu0
        %v1178 = vadd.f32 0.0, %v1177
        %1179 = vmatprep.mubr.bf16.mxu0 0
        %1180 = vmatmul.mubr.bf16.gmra.mrb[0].mxu0 %v1098
        %v1181 = vpop.f32.mrb[0].mxu0
        %v1182 = vadd.f32 0.0, %v1181
        %v1183 = vpop.f32.mrb[0].mxu0
        %v1184 = vadd.f32 0.0, %v1183
        %v1185 = vpop.f32.mrb[0].mxu0
        %v1186 = vadd.f32 0.0, %v1185
        %v1187 = vpop.f32.mrb[0].mxu0
        %v1188 = vadd.f32 0.0, %v1187
        %1189 = vmatprep.mubr.bf16.mxu0 0
        %1190 = vmatmul.mubr.bf16.gmra.mrb[0].mxu0 %v1101
        %v1191 = vpop.f32.mrb[0].mxu0
        %v1192 = vadd.f32 0.0, %v1191
        %v1193 = vpop.f32.mrb[0].mxu0
        %v1194 = vadd.f32 0.0, %v1193
        %v1195 = vpop.f32.mrb[0].mxu0
        %v1196 = vadd.f32 0.0, %v1195
        %v1197 = vpop.f32.mrb[0].mxu0
        %v1198 = vadd.f32 0.0, %v1197
        %1199 = vmatprep.mubr.bf16.mxu0 0
        %1200 = vmatmul.mubr.bf16.gmra.mrb[0].mxu0 %v1104
        %v1201 = vpop.f32.mrb[0].mxu0
        %v1202 = vadd.f32 0.0, %v1201
        %v1203 = vpop.f32.mrb[0].mxu0
        %v1204 = vadd.f32 0.0, %v1203
        %v1205 = vpop.f32.mrb[0].mxu0
        %v1206 = vadd.f32 0.0, %v1205
        %v1207 = vpop.f32.mrb[0].mxu0
        %v1208 = vadd.f32 0.0, %v1207
        %1209 = vmatprep.mubr.bf16.mxu0 0
        %1210 = vmatmul.mubr.bf16.gmra.mrb[0].mxu0 %v1107
        %v1211 = vpop.f32.mrb[0].mxu0
        %v1212 = vadd.f32 0.0, %v1211
        %v1213 = vpop.f32.mrb[0].mxu0
        %v1214 = vadd.f32 0.0, %v1213
        %v1215 = vpop.f32.mrb[0].mxu0
        %v1216 = vadd.f32 0.0, %v1215
        %v1217 = vpop.f32.mrb[0].mxu0
        %v1218 = vadd.f32 0.0, %v1217
        %1219 = vmatprep.mubr.bf16.mxu0 0
        %1220 = vmatmul.mubr.bf16.gmra.mrb[0].mxu0 %v1110
        %v1221 = vpop.f32.mrb[0].mxu0
        %v1222 = vadd.f32 0.0, %v1221
        %v1223 = vpop.f32.mrb[0].mxu0
        %v1224 = vadd.f32 0.0, %v1223
        %v1225 = vpop.f32.mrb[0].mxu0
        %v1226 = vadd.f32 0.0, %v1225
        %v1227 = vpop.f32.mrb[0].mxu0
        %v1228 = vadd.f32 0.0, %v1227
        %1229 = vmatprep.mubr.bf16.mxu0 0
        %1230 = vmatmul.mubr.bf16.gmra.mrb[0].mxu0 %v1113
        %v1231 = vpop.f32.mrb[0].mxu0
        %v1232 = vadd.f32 0.0, %v1231
        %v1233 = vpop.f32.mrb[0].mxu0
        %v1234 = vadd.f32 0.0, %v1233
        %v1235 = vpop.f32.mrb[0].mxu0
        %v1236 = vadd.f32 0.0, %v1235
        %v1237 = vpop.f32.mrb[0].mxu0
        %v1238 = vadd.f32 0.0, %v1237
        %1239 = vmatprep.mubr.bf16.mxu0 0
        %1240 = vmatmul.mubr.bf16.gmra.mrb[0].mxu0 %v1116
        %v1241 = vpop.f32.mrb[0].mxu0
        %v1242 = vadd.f32 0.0, %v1241
        %v1243 = vpop.f32.mrb[0].mxu0
        %v1244 = vadd.f32 0.0, %v1243
        %v1245 = vpop.f32.mrb[0].mxu0
        %v1246 = vadd.f32 0.0, %v1245
        %v1247 = vpop.f32.mrb[0].mxu0
        %v1248 = vadd.f32 0.0, %v1247
        %1249 = vmatprep.mubr.bf16.mxu0 0
        %1250 = vmatmul.mubr.bf16.gmra.mrb[0].mxu0 %v1119
        %v1251 = vpop.f32.mrb[0].mxu0
        %v1252 = vadd.f32 0.0, %v1251
        %v1253 = vpop.f32.mrb[0].mxu0
        %v1254 = vadd.f32 0.0, %v1253
        %v1255 = vpop.f32.mrb[0].mxu0
        %v1256 = vadd.f32 0.0, %v1255
        %v1257 = vpop.f32.mrb[0].mxu0
        %v1258 = vadd.f32 0.0, %v1257
        %1259 = vmatprep.mubr.bf16.mxu0 0
        %1260 = vmatmul.mubr.bf16.gmra.mrb[0].mxu0 %v1122
        %v1261 = vpop.f32.mrb[0].mxu0
        %v1262 = vadd.f32 0.0, %v1261
        %v1263 = vpop.f32.mrb[0].mxu0
        %v1264 = vadd.f32 0.0, %v1263
        %v1265 = vpop.f32.mrb[0].mxu0
        %v1266 = vadd.f32 0.0, %v1265
        %v1267 = vpop.f32.mrb[0].mxu0
        %v1268 = vadd.f32 0.0, %v1267
        %1269 = vmatprep.mubr.bf16.mxu0 0
        %1270 = vmatmul.mubr.bf16.gmra.mrb[0].mxu0 %v1125
        %v1271 = vpop.f32.mrb[0].mxu0
        %v1272 = vadd.f32 0.0, %v1271
        %v1273 = vpop.f32.mrb[0].mxu0
        %v1274 = vadd.f32 0.0, %v1273
        %v1275 = vpop.f32.mrb[0].mxu0
        %v1276 = vadd.f32 0.0, %v1275
        %v1277 = vpop.f32.mrb[0].mxu0
        %v1278 = vadd.f32 0.0, %v1277
        %1279 = vmatprep.mubr.bf16.mxu0 0
        %1280 = vmatmul.mubr.bf16.gmra.mrb[0].mxu0 %v1128
        %v1281 = vpop.f32.mrb[0].mxu0
        %v1282 = vadd.f32 0.0, %v1281
        %v1283 = vpop.f32.mrb[0].mxu0
        %v1284 = vadd.f32 0.0, %v1283
        %v1285 = vpop.f32.mrb[0].mxu0
        %v1286 = vadd.f32 0.0, %v1285
        %v1287 = vpop.f32.mrb[0].mxu0
        %v1288 = vadd.f32 0.0, %v1287
        %1289 = vdwg.mxu0
        %v1290 = vmul.f32 %v1172, %v897
        %v1291 = vmul.f32 %v1174, %v899
        %v1292 = vmul.f32 %v1176, %v901
        %v1293 = vmul.f32 %v1178, %v903
        %v1294 = vmul.f32 %v1202, %v940
        %v1295 = vmul.f32 %v1204, %v942
        %v1296 = vmul.f32 %v1206, %v944
        %v1297 = vmul.f32 %v1208, %v946
        %v1298 = vadd.f32 %v1290, %v1294
        %v1299 = vadd.f32 %v1291, %v1295
        %v1300 = vadd.f32 %v1292, %v1296
        %v1301 = vadd.f32 %v1293, %v1297
        %v1302 = vmul.f32 %v1232, %v983
        %v1303 = vmul.f32 %v1234, %v985
        %v1304 = vmul.f32 %v1236, %v987
        %v1305 = vmul.f32 %v1238, %v989
        %v1306 = vadd.f32 %v1298, %v1302
        %v1307 = vadd.f32 %v1299, %v1303
        %v1308 = vadd.f32 %v1300, %v1304
        %v1309 = vadd.f32 %v1301, %v1305
        %v1310 = vadd.f32 %v1306, %v1262
        %v1311 = vadd.f32 %v1307, %v1264
        %v1312 = vadd.f32 %v1308, %v1266
        %v1313 = vadd.f32 %v1309, %v1268
        %v1314 = vmul.f32 %v1182, %v897
        %v1315 = vmul.f32 %v1184, %v899
        %v1316 = vmul.f32 %v1186, %v901
        %v1317 = vmul.f32 %v1188, %v903
        %v1318 = vmul.f32 %v1212, %v940
        %v1319 = vmul.f32 %v1214, %v942
        %v1320 = vmul.f32 %v1216, %v944
        %v1321 = vmul.f32 %v1218, %v946
        %v1322 = vadd.f32 %v1314, %v1318
        %v1323 = vadd.f32 %v1315, %v1319
        %v1324 = vadd.f32 %v1316, %v1320
        %v1325 = vadd.f32 %v1317, %v1321
        %v1326 = vmul.f32 %v1242, %v983
        %v1327 = vmul.f32 %v1244, %v985
        %v1328 = vmul.f32 %v1246, %v987
        %v1329 = vmul.f32 %v1248, %v989
        %v1330 = vadd.f32 %v1322, %v1326
        %v1331 = vadd.f32 %v1323, %v1327
        %v1332 = vadd.f32 %v1324, %v1328
        %v1333 = vadd.f32 %v1325, %v1329
        %v1334 = vadd.f32 %v1330, %v1272
        %v1335 = vadd.f32 %v1331, %v1274
        %v1336 = vadd.f32 %v1332, %v1276
        %v1337 = vadd.f32 %v1333, %v1278
        %v1338 = vmul.f32 %v1192, %v897
        %v1339 = vmul.f32 %v1194, %v899
        %v1340 = vmul.f32 %v1196, %v901
        %v1341 = vmul.f32 %v1198, %v903
        %v1342 = vmul.f32 %v1222, %v940
        %v1343 = vmul.f32 %v1224, %v942
        %v1344 = vmul.f32 %v1226, %v944
        %v1345 = vmul.f32 %v1228, %v946
        %v1346 = vadd.f32 %v1338, %v1342
        %v1347 = vadd.f32 %v1339, %v1343
        %v1348 = vadd.f32 %v1340, %v1344
        %v1349 = vadd.f32 %v1341, %v1345
        %v1350 = vmul.f32 %v1252, %v983
        %v1351 = vmul.f32 %v1254, %v985
        %v1352 = vmul.f32 %v1256, %v987
        %v1353 = vmul.f32 %v1258, %v989
        %v1354 = vadd.f32 %v1346, %v1350
        %v1355 = vadd.f32 %v1347, %v1351
        %v1356 = vadd.f32 %v1348, %v1352
        %v1357 = vadd.f32 %v1349, %v1353
        %v1358 = vadd.f32 %v1354, %v1282
        %v1359 = vadd.f32 %v1355, %v1284
        %v1360 = vadd.f32 %v1356, %v1286
        %v1361 = vadd.f32 %v1357, %v1288
        %v1362 = vld [vmem:[#allocation10] sm:$0xff]
        %v1363 = vld [vmem:[#allocation10 + $0x8] sm:$0xff]
        %v1364 = vld [vmem:[#allocation10 + $0x10] sm:$0xff]
        %v1365 = vld [vmem:[#allocation10 + $0x18] sm:$0xff]
        %v1366 = vld [vmem:[#allocation10 + $0x20] sm:$0xff]
        %v1367 = vld [vmem:[#allocation10 + $0x28] sm:$0xff]
        %v1368 = vld [vmem:[#allocation10 + $0x30] sm:$0xff]
        %v1369 = vld [vmem:[#allocation10 + $0x38] sm:$0xff]
        %v1370 = vld [vmem:[#allocation10 + $0x40] sm:$0xff]
        %v1371 = vld [vmem:[#allocation10 + $0x48] sm:$0xff]
        %v1372 = vld [vmem:[#allocation10 + $0x50] sm:$0xff]
        %v1373 = vld [vmem:[#allocation10 + $0x58] sm:$0xff]
        %v1374 = vld [vmem:[#allocation10 + $0x60] sm:$0xff]
        %v1375 = vld [vmem:[#allocation10 + $0x68] sm:$0xff]
        %v1376 = vld [vmem:[#allocation10 + $0x70] sm:$0xff]
        %v1377 = vld [vmem:[#allocation10 + $0x78] sm:$0xff]
        %v1378 = vld [vmem:[#allocation10 + $0x80] sm:$0xff]
        %v1379 = vld [vmem:[#allocation10 + $0x88] sm:$0xff]
        %v1380 = vld [vmem:[#allocation10 + $0x90] sm:$0xff]
        %v1381 = vld [vmem:[#allocation10 + $0x98] sm:$0xff]
        %v1382 = vld [vmem:[#allocation10 + $0xa0] sm:$0xff]
        %v1383 = vld [vmem:[#allocation10 + $0xa8] sm:$0xff]
        %v1384 = vld [vmem:[#allocation10 + $0xb0] sm:$0xff]
        %v1385 = vld [vmem:[#allocation10 + $0xb8] sm:$0xff]
        %v1386 = vld [vmem:[#allocation10 + $0xc0] sm:$0xff]
        %v1387 = vld [vmem:[#allocation10 + $0xc8] sm:$0xff]
        %v1388 = vld [vmem:[#allocation10 + $0xd0] sm:$0xff]
        %v1389 = vld [vmem:[#allocation10 + $0xd8] sm:$0xff]
        %v1390 = vld [vmem:[#allocation10 + $0xe0] sm:$0xff]
        %v1391 = vld [vmem:[#allocation10 + $0xe8] sm:$0xff]
        %v1392 = vld [vmem:[#allocation10 + $0xf0] sm:$0xff]
        %v1393 = vld [vmem:[#allocation10 + $0xf8] sm:$0xff]
        %1394 = vmatprep.subr.mxu0 0.0
        %1395 = vmatpush1.msra.mxu0 %v1362
        %1396 = vmatprep.subr.mxu0 0.0
        %1397 = vmatpush1.msra.mxu0 %v1363
        %1398 = vmatprep.subr.mxu0 0.0
        %1399 = vmatpush1.msra.mxu0 %v1364
        %1400 = vmatprep.subr.mxu0 0.0
        %1401 = vmatpush1.msra.mxu0 %v1365
        %1402 = vmatprep.subr.mxu0 0.0
        %1403 = vmatpush1.msra.mxu0 %v1366
        %1404 = vmatprep.subr.mxu0 0.0
        %1405 = vmatpush1.msra.mxu0 %v1367
        %1406 = vmatprep.subr.mxu0 0.0
        %1407 = vmatpush1.msra.mxu0 %v1368
        %1408 = vmatprep.subr.mxu0 0.0
        %1409 = vmatpush1.msra.mxu0 %v1369
        %1410 = vmatprep.subr.mxu0 0.0
        %1411 = vmatpush1.msra.mxu0 %v1370
        %1412 = vmatprep.subr.mxu0 0.0
        %1413 = vmatpush1.msra.mxu0 %v1371
        %1414 = vmatprep.subr.mxu0 0.0
        %1415 = vmatpush1.msra.mxu0 %v1372
        %1416 = vmatprep.subr.mxu0 0.0
        %1417 = vmatpush1.msra.mxu0 %v1373
        %1418 = vmatprep.subr.mxu0 0.0
        %1419 = vmatpush1.msra.mxu0 %v1374
        %1420 = vmatprep.subr.mxu0 0.0
        %1421 = vmatpush1.msra.mxu0 %v1375
        %1422 = vmatprep.subr.mxu0 0.0
        %1423 = vmatpush1.msra.mxu0 %v1376
        %1424 = vmatprep.subr.mxu0 0.0
        %1425 = vmatpush1.msra.mxu0 %v1377
        %1426 = vmatprep.subr.mxu0 0.0
        %1427 = vmatpush1.msra.mxu0 %v1378
        %1428 = vmatprep.subr.mxu0 0.0
        %1429 = vmatpush1.msra.mxu0 %v1379
        %1430 = vmatprep.subr.mxu0 0.0
        %1431 = vmatpush1.msra.mxu0 %v1380
        %1432 = vmatprep.subr.mxu0 0.0
        %1433 = vmatpush1.msra.mxu0 %v1381
        %1434 = vmatprep.subr.mxu0 0.0
        %1435 = vmatpush1.msra.mxu0 %v1382
        %1436 = vmatprep.subr.mxu0 0.0
        %1437 = vmatpush1.msra.mxu0 %v1383
        %1438 = vmatprep.subr.mxu0 0.0
        %1439 = vmatpush1.msra.mxu0 %v1384
        %1440 = vmatprep.subr.mxu0 0.0
        %1441 = vmatpush1.msra.mxu0 %v1385
        %1442 = vmatprep.subr.mxu0 0.0
        %1443 = vmatpush1.msra.mxu0 %v1386
        %1444 = vmatprep.subr.mxu0 0.0
        %1445 = vmatpush1.msra.mxu0 %v1387
        %1446 = vmatprep.subr.mxu0 0.0
        %1447 = vmatpush1.msra.mxu0 %v1388
        %1448 = vmatprep.subr.mxu0 0.0
        %1449 = vmatpush1.msra.mxu0 %v1389
        %1450 = vmatprep.subr.mxu0 0.0
        %1451 = vmatpush1.msra.mxu0 %v1390
        %1452 = vmatprep.subr.mxu0 0.0
        %1453 = vmatpush1.msra.mxu0 %v1391
        %1454 = vmatprep.subr.mxu0 0.0
        %1455 = vmatpush1.msra.mxu0 %v1392
        %1456 = vmatprep.subr.mxu0 0.0
        %1457 = vmatpush1.msra.mxu0 %v1393
        %1458 = vmatprep.mubr.f32.mxu0 %v1311
        %1459 = vmatmul.mubr.f32.gmra.mrb[0].mxu0 %v1310
        %v1460 = vpop.f32.mrb[0].mxu0
        %v1461 = vadd.f32 0.0, %v1460
        %v1462 = vpop.f32.mrb[0].mxu0
        %1463 = vmatprep.mubr.f32.mxu0 %v1313
        %1464 = vmatmul.mubr.f32.gmra.mrb[0].mxu0 %v1312
        %v1465 = vpop.f32.mrb[0].mxu0
        %v1466 = vadd.f32 0.0, %v1465
        %v1467 = vpop.f32.mrb[0].mxu0
        %1468 = vmatprep.mubr.f32.mxu0 %v1335
        %1469 = vmatmul.mubr.f32.gmra.mrb[0].mxu0 %v1334
        %v1470 = vpop.f32.mrb[0].mxu0
        %v1471 = vadd.f32 0.0, %v1470
        %v1472 = vpop.f32.mrb[0].mxu0
        %1473 = vmatprep.mubr.f32.mxu0 %v1337
        %1474 = vmatmul.mubr.f32.gmra.mrb[0].mxu0 %v1336
        %v1475 = vpop.f32.mrb[0].mxu0
        %v1476 = vadd.f32 0.0, %v1475
        %v1477 = vpop.f32.mrb[0].mxu0
        %1478 = vmatprep.mubr.f32.mxu0 %v1359
        %1479 = vmatmul.mubr.f32.gmra.mrb[0].mxu0 %v1358
        %v1480 = vpop.f32.mrb[0].mxu0
        %v1481 = vadd.f32 0.0, %v1480
        %v1482 = vpop.f32.mrb[0].mxu0
        %1483 = vmatprep.mubr.f32.mxu0 %v1361
        %1484 = vmatmul.mubr.f32.gmra.mrb[0].mxu0 %v1360
        %v1485 = vpop.f32.mrb[0].mxu0
        %v1486 = vadd.f32 0.0, %v1485
        %v1487 = vpop.f32.mrb[0].mxu0
        %1488 = vdwg.mxu0
        %1489 = vst.msk [vmem:[%s326] sm:$0xff] %vm1093, %v1461
        %1490 = vst.msk [vmem:[%s326 + $0x8] sm:$0xff] %vm1093, %v1466
        %s1491 = scalar_lea.vmem %s326, 16 [#allocation11]
        %1492 = vst.msk [vmem:[%s1491] sm:$0xff] %vm1093, %v1471
        %1493 = vst.msk [vmem:[%s1491 + $0x8] sm:$0xff] %vm1093, %v1476
        %s1494 = scalar_lea.vmem %s326, 32 [#allocation11]
        %1495 = vst.msk [vmem:[%s1494] sm:$0xff] %vm1093, %v1481
        %1496 = vst.msk [vmem:[%s1494 + $0x8] sm:$0xff] %vm1093, %v1486
        %s1497 = sand.u32 %s149, 1
        %s1498 = scalar_lea.sflag [#allocation4], %s1497
        %s1499 = sand.u32 %s149, 1
        %s1500 = smul.addr %s1499, 48
        %s1501 = scalar_lea.vmem [#allocation11], %s1500
        // Predicated region
        $region61: #{tpu_custom_call.1} parent=39 // pred_check
          %p1502 = pneg %p159
        $region62: #{tpu_custom_call.1} parent=39 // pred_check_branch
          %1504 = sbr.rel (%p1502) target = $region64
        $region63: #{tpu_custom_call.1} parent=39 // pred_region
          #allocation13 [shape = 'u32[6]{0}', space=smem, size = 0x18, scoped, tag = 'DMA stride descriptor']
          %s1505 = smul.u32 2, %s26
          %s1507 = ssub.s32 768, 768
          %1508 = vsyncadd %s1498, %s1507
          %s1509 = smul.addr %s1505, 128
          %s1510 = scalar_lea.hbm %s5, %s1509
          %s1512 = sshll.u32 1, 14
          %s1513 = sxor.u32 4294967295, %s1512
          %s1516 = sshll.u32 7, 18
          %s1517 = sxor.u32 4294967295, %s1516
          %s1518 = sand.u32 0, %s1517
          %s1520 = sor.u32 %s1518, 0
          %s1522 = sshll.u32 3, 24
          %s1523 = sxor.u32 4294967295, %s1522
          %s1524 = sand.u32 %s1520, %s1523
          %s1526 = sor.u32 %s1524, 0
          %s1527 = sshll.u32 %s1501, 4
          %s1528 = int_to_ptr.vmem [resolvable:$true] %s1527
          %1534 = sst [smem:[#allocation13]] 256
          %s1535 = scalar_lea.smem [#allocation13], 1
          %1536 = sst [smem:[%s1535]] 768
          %s1537 = scalar_lea.smem [#allocation13], 2
          %1538 = sst [smem:[%s1537]] 2
          %s1539 = scalar_lea.smem [#allocation13], 3
          %1540 = sst [smem:[%s1539]] 128
          %s1541 = scalar_lea.smem [#allocation13], 4
          %1542 = sst [smem:[%s1541]] 128
          %s1543 = scalar_lea.smem [#allocation13], 5
          %1544 = sst [smem:[%s1543]] 8
          %1546 = dma.general %s1528, 768, %s1510, %s1498, [#allocation12], [#allocation13], %s1526, 0
        $region64: #{tpu_custom_call.1} parent=39 // pred_fallthru
          _
      $region40: #{tpu_custom_call.1} parent=5 // pred_fallthru
        _
      %p1547 = scmp.le.s32.totalorder 2, %s21
      // Predicated region
      $region65: #{tpu_custom_call.1} parent=5 // pred_check
        %p1548 = pneg %p1547
      $region66: #{tpu_custom_call.1} parent=5 // pred_check_branch
        %1550 = sbr.rel (%p1548) target = $region68
      $region67: #{tpu_custom_call.1} parent=5 // pred_region
        %s1551 = ssub.s32 %s21, 2
        // Predicated region
        $region69: #{tpu_custom_call.1} parent=67 // pred_check
          %p1552 = pneg %p165
        $region70: #{tpu_custom_call.1} parent=67 // pred_check_branch
          %1554 = sbr.rel (%p1552) target = $region72
        $region71: #{tpu_custom_call.1} parent=67 // pred_region
          %s1555 = sand.u32 %s150, 1
          %s1556 = scalar_lea.sflag [#allocation4], %s1555
          %s1557 = sand.u32 %s150, 1
          %s1558 = smul.addr %s1557, 48
          %s1559 = scalar_lea.vmem [#allocation11], %s1558
          %1560 = dma.done %s1556, 768
        $region72: #{tpu_custom_call.1} parent=67 // pred_fallthru
          _
      $region68: #{tpu_custom_call.1} parent=5 // pred_fallthru
        _
    $region6: #{tpu_custom_call.1} parent=1 // loop_footer
      %s25 = sadd.s32 1, %s21
    $region7: #{tpu_custom_call.1} parent=1 // loop_footer_branch
      %20 = sbr.rel target = $region3
    $region8: #{tpu_custom_call.1} parent=1 // loop_exit
      _
    %1561 = vsyncpa [#allocation3], 1
    %s1562 = scalar_lea.sflag [#allocation3], 1
    %1563 = vsyncpa %s1562, 1
    %1564 = vsyncpa [#allocation6], 1
    %s1565 = scalar_lea.sflag [#allocation6], 1
    %1566 = vsyncpa %s1565, 1
    %1567 = vsyncpa [#allocation9], 1
    %1568 = vsyncpa [#allocation4], 1
    %s1569 = scalar_lea.sflag [#allocation4], 1
    %1570 = vsyncpa %s1569, 1

</llo_original>
